<compile_context>
chip_gen: v7x
topology: tpu7x:2x2x1
jax: 0.10.0
libtpu: 0.0.40
codegen_flags: <defaults>
</compile_context>

<pallas_src>
import functools
import math

import jax
import jax.numpy as jnp
from jax.experimental import pallas as pl
from jax.experimental.pallas import tpu as pltpu


def _round_up(x, m):
    return (x + m - 1) // m * m


# ---------------------------------------------------------------------------
# Pallas kernels
# ---------------------------------------------------------------------------
def _mm_kernel(a_ref, b_ref, s_ref, t_ref, o_ref, acc_ref, *, relu):
    """o = act((a @ b) * s + t); s/t are per-output-column (fused bias / BN)."""
    @pl.when(pl.program_id(2) == 0)
    def _():
        acc_ref[...] = jnp.zeros_like(acc_ref)

    acc_ref[...] += jnp.dot(a_ref[...], b_ref[...],
                            preferred_element_type=jnp.float32)

    @pl.when(pl.program_id(2) == pl.num_programs(2) - 1)
    def _():
        y = acc_ref[...] * s_ref[...] + t_ref[...]
        if relu:
            y = jnp.maximum(y, 0.0)
        o_ref[...] = y.astype(o_ref.dtype)


def _mm_res_kernel(a_ref, b_ref, s_ref, t_ref, r_ref, o_ref, acc_ref, *, relu):
    """o = act((a @ b) * s + t + r); residual add fused into the epilogue."""
    @pl.when(pl.program_id(2) == 0)
    def _():
        acc_ref[...] = jnp.zeros_like(acc_ref)

    acc_ref[...] += jnp.dot(a_ref[...], b_ref[...],
                            preferred_element_type=jnp.float32)

    @pl.when(pl.program_id(2) == pl.num_programs(2) - 1)
    def _():
        y = acc_ref[...] * s_ref[...] + t_ref[...] + r_ref[...]
        if relu:
            y = jnp.maximum(y, 0.0)
        o_ref[...] = y.astype(o_ref.dtype)


@functools.lru_cache(maxsize=None)
def _build_matmul(Mp, Np, Kp, tm, tn, tk, relu, has_res):
    kernel = functools.partial(_mm_res_kernel if has_res else _mm_kernel,
                               relu=relu)
    in_specs = [
        pl.BlockSpec((tm, tk), lambda i, j, k: (i, k)),   # A (bf16)
        pl.BlockSpec((tk, tn), lambda i, j, k: (k, j)),   # B (bf16)
        pl.BlockSpec((1, tn), lambda i, j, k: (0, j)),    # scale
        pl.BlockSpec((1, tn), lambda i, j, k: (0, j)),    # shift
    ]
    if has_res:
        in_specs.append(pl.BlockSpec((tm, tn), lambda i, j, k: (i, j)))  # residual
    fn = pl.pallas_call(
        kernel,
        out_shape=jax.ShapeDtypeStruct((Mp, Np), jnp.float32),
        grid_spec=pltpu.PrefetchScalarGridSpec(
            num_scalar_prefetch=0,
            grid=(Mp // tm, Np // tn, Kp // tk),
            in_specs=in_specs,
            out_specs=pl.BlockSpec((tm, tn), lambda i, j, k: (i, j)),
            scratch_shapes=[pltpu.VMEM((tm, tn), jnp.float32)],
        ),
        compiler_params=pltpu.CompilerParams(
            dimension_semantics=("parallel", "parallel", "arbitrary")),
    )
    return jax.jit(fn)


def _pick_tk(Kp, cap=2048):
    """Largest 128-multiple divisor of Kp (Kp % 128 == 0) not exceeding cap."""
    d = Kp // 128
    best = 1
    for e in range(1, min(d, cap // 128) + 1):
        if d % e == 0:
            best = e
    return 128 * best


def matmul_scale_shift(a, w, scale, shift, *, relu, residual=None):
    """y = act((a @ w) * scale + shift [+ residual]); scale/shift per column."""
    M, K = a.shape
    Kw, N = w.shape
    assert K == Kw

    if M >= 512:
        tm = 256
    elif M >= 128:
        tm = 128
    else:
        tm = _round_up(max(M, 1), 8)
    tn = min(_round_up(N, 128), 512)      # full-N weight panel stays resident
    Kp = _round_up(K, 128)
    tk = _pick_tk(Kp)
    Mp = _round_up(M, tm)
    Np = _round_up(N, tn)

    a_p = jnp.pad(a.astype(jnp.bfloat16), ((0, Mp - M), (0, Kp - K)))
    w_p = jnp.pad(w.astype(jnp.bfloat16), ((0, Kp - K), (0, Np - N)))
    s_p = jnp.pad(scale.astype(jnp.float32).reshape(1, N), ((0, 0), (0, Np - N)))
    t_p = jnp.pad(shift.astype(jnp.float32).reshape(1, N), ((0, 0), (0, Np - N)))
    args = [a_p, w_p, s_p, t_p]
    has_res = residual is not None
    if has_res:
        r_p = jnp.pad(residual.astype(jnp.float32), ((0, Mp - M), (0, Np - N)))
        args.append(r_p)

    out = _build_matmul(Mp, Np, Kp, tm, tn, tk, bool(relu), has_res)(*args)
    return out[:M, :N]


# ---------------------------------------------------------------------------
# Small element-wise / reduction Pallas kernels
# ---------------------------------------------------------------------------
def _bn_max4_kernel(a_ref, b_ref, c_ref, d_ref, s_ref, t_ref, o_ref):
    # Eval-mode BN affine applied to each pooling candidate BEFORE the max
    # (exact even when the folded scale is negative), then 2x2 max.
    s = s_ref[...]
    t = t_ref[...]
    o_ref[...] = jnp.maximum(
        jnp.maximum(a_ref[...] * s + t, b_ref[...] * s + t),
        jnp.maximum(c_ref[...] * s + t, d_ref[...] * s + t))


@functools.lru_cache(maxsize=None)
def _build_bn_max4(shape):
    return jax.jit(pl.pallas_call(
        _bn_max4_kernel, out_shape=jax.ShapeDtypeStruct(shape, jnp.float32)))


def _mean_kernel(x_ref, o_ref):
    o_ref[...] = jnp.mean(x_ref[...], axis=1)


@functools.lru_cache(maxsize=None)
def _build_mean(shape):
    B, S, C = shape
    return jax.jit(pl.pallas_call(
        _mean_kernel, out_shape=jax.ShapeDtypeStruct((B, C), jnp.float32)))


def maxpool2d_bn(x, scale, shift):
    """BatchNorm2d (eval, folded) + MaxPool2d(2) fused; x is NHWC."""
    B, H, W, C = x.shape
    Ho, Wo = H // 2, W // 2
    x = x[:, :2 * Ho, :2 * Wo, :].astype(jnp.float32)
    views = [x[:, 0::2, 0::2, :], x[:, 0::2, 1::2, :],
             x[:, 1::2, 0::2, :], x[:, 1::2, 1::2, :]]
    flats = [v.reshape(B * Ho * Wo, C) for v in views]
    s = scale.astype(jnp.float32).reshape(1, C)
    t = shift.astype(jnp.float32).reshape(1, C)
    out = _build_bn_max4(flats[0].shape)(flats[0], flats[1], flats[2], flats[3], s, t)
    return out.reshape(B, Ho, Wo, C)


def global_avgpool3d(x):
    """AdaptiveAvgPool3d((1,1,1)) + flatten; x is (B, T, H, W, C) channels-last."""
    B, C = x.shape[0], x.shape[-1]
    xm = x.reshape(B, -1, C).astype(jnp.float32)
    return _build_mean(xm.shape)(xm)     # lane-dense (B, C) output


# ---------------------------------------------------------------------------
# Convolutions: channels-last im2col (glue) + Pallas matmul (hot path)
# ---------------------------------------------------------------------------
def conv2d_cl(x, w, scale, shift, *, stride, padding, relu):
    # x: (B, H, W, C) channels-last; w: (O, C, kh, kw) PyTorch layout
    B, H, W, C = x.shape
    O, _, kh, kw = w.shape
    sh, sw = stride
    ph, pw = padding
    xp = jnp.pad(x, ((0, 0), (ph, ph), (pw, pw), (0, 0)))
    Ho = (H + 2 * ph - kh) // sh + 1
    Wo = (W + 2 * pw - kw) // sw + 1
    cols = []
    for dh in range(kh):
        for dw in range(kw):
            cols.append(xp[:, dh:dh + sh * Ho:sh, dw:dw + sw * Wo:sw, :])
    p = jnp.stack(cols, axis=3).reshape(B * Ho * Wo, kh * kw * C)
    wm = jnp.transpose(w, (2, 3, 1, 0)).reshape(kh * kw * C, O)
    y = matmul_scale_shift(p, wm, scale, shift, relu=relu)
    return y.reshape(B, Ho, Wo, O)


def conv3d_cl(x, w, scale, shift, *, stride, padding, relu, residual=None):
    # x: (B, T, H, W, C) channels-last; w: (O, C, kt, kh, kw) PyTorch layout
    B, T, H, W, C = x.shape
    O, _, kt, kh, kw = w.shape
    st, sh, sw = stride
    pt, ph, pw = padding
    xp = jnp.pad(x, ((0, 0), (pt, pt), (ph, ph), (pw, pw), (0, 0)))
    To = (T + 2 * pt - kt) // st + 1
    Ho = (H + 2 * ph - kh) // sh + 1
    Wo = (W + 2 * pw - kw) // sw + 1
    cols = []
    for dt in range(kt):
        for dh in range(kh):
            for dw in range(kw):
                cols.append(xp[:, dt:dt + st * To:st,
                               dh:dh + sh * Ho:sh,
                               dw:dw + sw * Wo:sw, :])
    p = jnp.stack(cols, axis=4).reshape(B * To * Ho * Wo, kt * kh * kw * C)
    wm = jnp.transpose(w, (2, 3, 4, 1, 0)).reshape(kt * kh * kw * C, O)
    r = None if residual is None else residual.reshape(B * To * Ho * Wo, O)
    y = matmul_scale_shift(p, wm, scale, shift, relu=relu, residual=r)
    return y.reshape(B, To, Ho, Wo, O)


# ---------------------------------------------------------------------------
# Model forward (channels-last)
# ---------------------------------------------------------------------------
_LAYER_STRIDES = (1, 2, 2, 2)


def basic_block3d(x, bp, s):
    out = conv3d_cl(x, bp['conv1_w'], bp['bn1_scale'], bp['bn1_shift'],
                    stride=(s, s, s), padding=(1, 1, 1), relu=True)
    if 'down_w' in bp:
        identity = conv3d_cl(x, bp['down_w'], bp['down_scale'], bp['down_shift'],
                             stride=(s, s, s), padding=(0, 0, 0), relu=False)
    else:
        identity = x
    # conv2 + BN2 + residual add + ReLU fused into a single matmul epilogue
    return conv3d_cl(out, bp['conv2_w'], bp['bn2_scale'], bp['bn2_shift'],
                     stride=(1, 1, 1), padding=(1, 1, 1), relu=True,
                     residual=identity)


def resnet_forward(p, x):
    # x: (B, T, H, W, 3) channels-last -> (B, 512)   [r3d_18 without final fc]
    x = conv3d_cl(x, p['stem_w'], p['stem_scale'], p['stem_shift'],
                  stride=(1, 2, 2), padding=(1, 3, 3), relu=True)
    for li, blocks in enumerate(p['layers']):
        for bi, bp in enumerate(blocks):
            s = _LAYER_STRIDES[li] if bi == 0 else 1
            x = basic_block3d(x, bp, s)
    return global_avgpool3d(x)


def audio_forward(p, x_nchw):
    # x: (B, 1, 94, 150) NCHW -> (B, 128)
    x = jnp.transpose(x_nchw, (0, 2, 3, 1))                        # NHWC once
    x = conv2d_cl(x, p['conv1_w'], jnp.ones((16,), jnp.float32), p['conv1_b'],
                  stride=(2, 2), padding=(0, 0), relu=True)        # Conv + ReLU
    x = maxpool2d_bn(x, p['bn1_scale'], p['bn1_shift'])            # BN + MaxPool
    x = conv2d_cl(x, p['conv2_w'], jnp.ones((8,), jnp.float32), p['conv2_b'],
                  stride=(1, 1), padding=(0, 0), relu=True)
    x = maxpool2d_bn(x, p['bn2_scale'], p['bn2_shift'])
    B, Ho, Wo, C = x.shape
    x = x.reshape(B, Ho * Wo * C)                                  # (B, 1360), HWC order
    # Linear weight is declared for PyTorch's CHW flatten order; permute it once.
    w = (p['lin_w'].reshape(128, C, Ho, Wo).transpose(0, 2, 3, 1)
         .reshape(128, Ho * Wo * C)).T
    return matmul_scale_shift(x, w, jnp.ones((128,), jnp.float32),
                              p['lin_b'], relu=True)


def _classifier_forward(params, audio_arr, video_arr, motion_arr):
    B = video_arr.shape[0]
    # video_arr: (B, T, C, H, W) -> channels-last (B, T, H, W, C)
    video_cl = jnp.transpose(video_arr, (0, 1, 3, 4, 2))
    # motion_arr: (B, T, W, H, C); torch does .transpose(2,4).transpose(1,2)
    # giving (B, C, T, H, W); channels-last equivalent is (B, T, H, W, C):
    motion_cl = jnp.transpose(motion_arr, (0, 1, 3, 2, 4))
    # Shared-weight trunk: batch video + kinect and run the ResNet once.
    feats = resnet_forward(params['resnet'],
                           jnp.concatenate([video_cl, motion_cl], axis=0))
    v_feat, k_feat = feats[:B], feats[B:]
    a_feat = audio_forward(params['audio'], audio_arr)
    x = jnp.concatenate([a_feat, v_feat, k_feat], axis=1)          # (B, 1152)
    return matmul_scale_shift(x, params['lin_w'].T,
                              jnp.ones((7,), jnp.float32), params['lin_b'],
                              relu=False)


classifier_forward = jax.jit(_classifier_forward)


# ---------------------------------------------------------------------------
# Deterministic parameter init (synthetic weights, PyTorch shapes)
# ---------------------------------------------------------------------------
def _conv_w(key, o, i, *k):
    fan_in = i * math.prod(k)
    return jax.random.normal(key, (o, i) + tuple(k), jnp.float32) * (2.0 / fan_in) ** 0.5


def _bn_fold(key, c, eps=1e-5):
    k1, k2, k3, k4 = jax.random.split(key, 4)
    gamma = 1.0 + 0.1 * jax.random.normal(k1, (c,), jnp.float32)
    beta = 0.1 * jax.random.normal(k2, (c,), jnp.float32)
    mean = 0.1 * jax.random.normal(k3, (c,), jnp.float32)
    var = 1.0 + 0.1 * jax.random.uniform(k4, (c,), jnp.float32)
    scale = gamma * jax.lax.rsqrt(var + eps)
    shift = beta - mean * scale
    return scale, shift


def _init_resnet(key):
    ks = iter(jax.random.split(key, 64))
    p = {'stem_w': _conv_w(next(ks), 64, 3, 3, 7, 7)}
    p['stem_scale'], p['stem_shift'] = _bn_fold(next(ks), 64)
    specs = [(64, 64, 1), (64, 128, 2), (128, 256, 2), (256, 512, 2)]
    p['layers'] = []
    for cin, cout, stride in specs:
        blocks = []
        for b in range(2):
            ci = cin if b == 0 else cout
            s = stride if b == 0 else 1
            bp = {'conv1_w': _conv_w(next(ks), cout, ci, 3, 3, 3)}
            bp['bn1_scale'], bp['bn1_shift'] = _bn_fold(next(ks), cout)
            bp['conv2_w'] = _conv_w(next(ks), cout, cout, 3, 3, 3)
            bp['bn2_scale'], bp['bn2_shift'] = _bn_fold(next(ks), cout)
            if b == 0 and (s != 1 or ci != cout):
                bp['down_w'] = _conv_w(next(ks), cout, ci, 1, 1, 1)
                bp['down_scale'], bp['down_shift'] = _bn_fold(next(ks), cout)
            blocks.append(bp)
        p['layers'].append(blocks)
    return p


def _init_audio(key):
    ks = iter(jax.random.split(key, 16))
    p = {'conv1_w': _conv_w(next(ks), 16, 1, 4, 4),
         'conv1_b': 0.05 * jax.random.normal(next(ks), (16,), jnp.float32)}
    p['bn1_scale'], p['bn1_shift'] = _bn_fold(next(ks), 16)
    p['conv2_w'] = _conv_w(next(ks), 8, 16, 4, 4)
    p['conv2_b'] = 0.05 * jax.random.normal(next(ks), (8,), jnp.float32)
    p['bn2_scale'], p['bn2_shift'] = _bn_fold(next(ks), 8)
    p['lin_w'] = jax.random.normal(next(ks), (128, 1360), jnp.float32) * (1.0 / 1360.0) ** 0.5
    p['lin_b'] = 0.05 * jax.random.normal(next(ks), (128,), jnp.float32)
    return p


def init_classifier_params(key):
    k_res, k_aud, k1, k2 = jax.random.split(key, 4)
    return {
        'resnet': _init_resnet(k_res),
        'audio': _init_audio(k_aud),
        'lin_w': jax.random.normal(k1, (7, 1024 + 128), jnp.float32) * (1.0 / 1152.0) ** 0.5,
        'lin_b': 0.05 * jax.random.normal(k2, (7,), jnp.float32),
    }


# ---------------------------------------------------------------------------
if __name__ == "__main__":
    key = jax.random.PRNGKey(0)
    kp, ka, kv, km = jax.random.split(key, 4)
    params = init_classifier_params(kp)

    # audio spectrogram 94x150 so that Audio's flatten == 1360 (= 8*10*17).
    audio_arr = jax.random.normal(ka, (2, 1, 94, 150), jnp.float32)
    # video: (B, T, C, H, W) -> transpose(1,2) gives (B, 3, T, H, W) for r3d_18
    video_arr = jax.random.normal(kv, (2, 8, 3, 32, 32), jnp.float32)
    # motion: (B, T, W, H, 3) -> transpose(2,4) -> transpose(1,2) gives (B,3,T,H,W)
    motion_arr = jax.random.normal(km, (2, 8, 32, 32, 3), jnp.float32)

    out = classifier_forward(params, audio_arr, video_arr, motion_arr)
    out = jax.block_until_ready(out)
    assert out.shape == (2, 7), out.shape
    assert bool(jnp.all(jnp.isfinite(out)))
    print("KERNEL_OK")
</pallas_src>

<mosaic_0001>
module attributes {stable_mosaic.version = 11 : i64} {
  func.func @_mm_kernel(%arg0: i32, %arg1: i32, %arg2: i32, %arg3: memref<256x512xbf16, #tpu.memory_space<vmem>>, %arg4: memref<512x128xbf16, #tpu.memory_space<vmem>>, %arg5: memref<1x128xf32, #tpu.memory_space<vmem>>, %arg6: memref<1x128xf32, #tpu.memory_space<vmem>>, %arg7: memref<256x128xf32, #tpu.memory_space<vmem>>, %arg8: memref<256x128xf32, #tpu.memory_space<vmem>>) attributes {dimension_semantics = [#tpu.dimension_semantics<parallel>, #tpu.dimension_semantics<parallel>, #tpu.dimension_semantics<arbitrary>], iteration_bounds = array<i64: 32, 1, 1>, scalar_prefetch = 0 : i64, scratch_operands = 1 : i64, tpu.core_type = #tpu.core_type<tc>, window_params = [{transform_indices = @transform_0, window_bounds = array<i64: 256, 512>}, {transform_indices = @transform_1, window_bounds = array<i64: 512, 128>}, {transform_indices = @transform_2, window_bounds = array<i64: 1, 128>}, {transform_indices = @transform_3, window_bounds = array<i64: 1, 128>}, {transform_indices = @transform_4, window_bounds = array<i64: 256, 128>}]} {
    %c0_i32 = arith.constant 0 : i32
    %0 = arith.cmpi eq, %arg2, %c0_i32 : i32
    %1 = arith.extui %0 : i1 to i32
    %c0_i32_0 = arith.constant 0 : i32
    %2 = arith.cmpi ne, %1, %c0_i32_0 : i32
    scf.if %2 {
      %cst_10 = arith.constant 0.000000e+00 : f32
      %12 = vector.broadcast %cst_10 : f32 to vector<256x128xf32>
      %c0_11 = arith.constant 0 : index
      %c0_12 = arith.constant 0 : index
      %13 = vector.load %arg8[%c0_11, %c0_12] : memref<256x128xf32, #tpu.memory_space<vmem>>, vector<256x128xf32>
      tpu.vector_store %arg8[%c0_11, %c0_12], %12 {strides = array<i32>} : memref<256x128xf32, #tpu.memory_space<vmem>>, vector<256x128xf32>,
    } else {
    }
    %c0 = arith.constant 0 : index
    %c0_1 = arith.constant 0 : index
    %3 = vector.load %arg8[%c0, %c0_1] : memref<256x128xf32, #tpu.memory_space<vmem>>, vector<256x128xf32>
    %c0_2 = arith.constant 0 : index
    %c0_3 = arith.constant 0 : index
    %4 = vector.load %arg3[%c0_2, %c0_3] : memref<256x512xbf16, #tpu.memory_space<vmem>>, vector<256x512xbf16>
    %c0_4 = arith.constant 0 : index
    %c0_5 = arith.constant 0 : index
    %5 = vector.load %arg4[%c0_4, %c0_5] : memref<512x128xbf16, #tpu.memory_space<vmem>>, vector<512x128xbf16>
    %cst = arith.constant dense<0.000000e+00> : vector<256x128xf32>
    %6 = tpu.matmul %4, %5, %cst {dimension_numbers = #tpu.dot_dimension_numbers<[1], [0], [0], [1], [0, 0, 1, 1], [], []>} : vector<256x512xbf16>, vector<512x128xbf16>, vector<256x128xf32> -> vector<256x128xf32>
    %7 = arith.addf %3, %6 : vector<256x128xf32>
    %c0_6 = arith.constant 0 : index
    %c0_7 = arith.constant 0 : index
    %8 = vector.load %arg8[%c0_6, %c0_7] : memref<256x128xf32, #tpu.memory_space<vmem>>, vector<256x128xf32>
    tpu.vector_store %arg8[%c0_6, %c0_7], %7 {strides = array<i32>} : memref<256x128xf32, #tpu.memory_space<vmem>>, vector<256x128xf32>,
    %c0_i32_8 = arith.constant 0 : i32
    %9 = arith.cmpi eq, %arg2, %c0_i32_8 : i32
    %10 = arith.extui %9 : i1 to i32
    %c0_i32_9 = arith.constant 0 : i32
    %11 = arith.cmpi ne, %10, %c0_i32_9 : i32
    scf.if %11 {
      %c0_10 = arith.constant 0 : index
      %c0_11 = arith.constant 0 : index
      %12 = vector.load %arg8[%c0_10, %c0_11] : memref<256x128xf32, #tpu.memory_space<vmem>>, vector<256x128xf32>
      %c0_12 = arith.constant 0 : index
      %c0_13 = arith.constant 0 : index
      %13 = vector.load %arg5[%c0_12, %c0_13] : memref<1x128xf32, #tpu.memory_space<vmem>>, vector<1x128xf32>
      %14 = vector.broadcast %13 : vector<1x128xf32> to vector<256x128xf32>
      %15 = arith.mulf %12, %14 : vector<256x128xf32>
      %c0_14 = arith.constant 0 : index
      %c0_15 = arith.constant 0 : index
      %16 = vector.load %arg6[%c0_14, %c0_15] : memref<1x128xf32, #tpu.memory_space<vmem>>, vector<1x128xf32>
      %17 = vector.broadcast %16 : vector<1x128xf32> to vector<256x128xf32>
      %18 = arith.addf %15, %17 : vector<256x128xf32>
      %cst_16 = arith.constant 0.000000e+00 : f32
      %19 = vector.broadcast %cst_16 : f32 to vector<256x128xf32>
      %20 = arith.maximumf %18, %19 : vector<256x128xf32>
      %c0_17 = arith.constant 0 : index
      %c0_18 = arith.constant 0 : index
      %21 = vector.load %arg7[%c0_17, %c0_18] : memref<256x128xf32, #tpu.memory_space<vmem>>, vector<256x128xf32>
      tpu.vector_store %arg7[%c0_17, %c0_18], %20 {strides = array<i32>} : memref<256x128xf32, #tpu.memory_space<vmem>>, vector<256x128xf32>,
    } else {
    }
    return
  }
  func.func @transform_0(%arg0: i32, %arg1: i32, %arg2: i32) -> (i32, i32) {
    %c0_i32 = arith.constant 0 : i32
    return %arg0, %arg2 : i32, i32
  }
  func.func @transform_1(%arg0: i32, %arg1: i32, %arg2: i32) -> (i32, i32) {
    %c0_i32 = arith.constant 0 : i32
    return %arg2, %arg1 : i32, i32
  }
  func.func @transform_2(%arg0: i32, %arg1: i32, %arg2: i32) -> (i32, i32) {
    %c0_i32 = arith.constant 0 : i32
    %c0_i32_0 = arith.constant 0 : i32
    return %c0_i32, %arg1 : i32, i32
  }
  func.func @transform_3(%arg0: i32, %arg1: i32, %arg2: i32) -> (i32, i32) {
    %c0_i32 = arith.constant 0 : i32
    %c0_i32_0 = arith.constant 0 : i32
    return %c0_i32, %arg1 : i32, i32
  }
  func.func @transform_4(%arg0: i32, %arg1: i32, %arg2: i32) -> (i32, i32) {
    %c0_i32 = arith.constant 0 : i32
    return %arg0, %arg1 : i32, i32
  }
}

</mosaic_0001>

<llo_original>
// kernel: tpu_custom_call.1
$region0: #{tpu_custom_call.1}
  #allocation0 [shape = 'u32[]', space=smem, size = 0x4, offset = 0x4, fixed_abs, tag = 'smem constant byte address 0x4 - core index']
  #allocation1 [shape = 'u32[144,128]{1,0:T(1,128)}', space=vmem, size = 0x12000, scoped, tag = 'internal scratch']
  #allocation2 [shape = 'f32[256,128]{1,0:T(8,128)}', space=vmem, size = 0x20000, scoped, tag = 'scratch operand']
  %s0 = inlined_call_operand.hbm [shape: bf16[8192,512], index: 0, kind: input, shape index: {}]
  %s1 = inlined_call_operand.hbm [shape: bf16[512,128], index: 1, kind: input, shape index: {}]
  %s2 = inlined_call_operand.hbm [shape: f32[1,128], index: 2, kind: input, shape index: {}]
  %s3 = inlined_call_operand.hbm [shape: f32[1,128], index: 3, kind: input, shape index: {}]
  %s4 = inlined_call_operand.hbm [shape: f32[8192,128], index: 4, kind: output, shape index: {}]
  %s5 = sld [smem:[#allocation0]]
  $region73: #{tpu_custom_call.1} parent=0
    _
  %s7 = ssub.s32 1, %s5
  %s8 = scalar_select 0, %s7, %s5
  $region1: #{tpu_custom_call.1} parent=0
    #allocation3 [shape = 'u8[524288]{0}', space=vmem, size = 0x80000, scoped, tag = 'input window, operand 0']
    #allocation4 [shape = 's32[2]{0}', space=sflag, size = 0x8, scoped, tag = 'scoped memory for tpu_custom_call.1']
    #allocation5 [shape = 's32[2]{0}', space=sflag, size = 0x8, scoped, tag = 'scoped memory for tpu_custom_call.1']
    #allocation6 [shape = 'u8[131072]{0}', space=vmem, size = 0x20000, scoped, tag = 'input window, operand 1, single buffered']
    #allocation7 [shape = 's32[1]{0}', space=sflag, size = 0x4, scoped, tag = 'scoped memory for tpu_custom_call.1']
    #allocation8 [shape = 'u8[512]{0}', space=vmem, size = 0x400, scoped, tag = 'input window, operand 2, single buffered']
    #allocation9 [shape = 'u8[512]{0}', space=vmem, size = 0x400, scoped, tag = 'input window, operand 3, single buffered']
    #allocation10 [shape = 's32[1]{0}', space=sflag, size = 0x4, scoped, tag = 'scoped memory for tpu_custom_call.1']
    #allocation11 [shape = 'u8[262144]{0}', space=vmem, size = 0x40000, scoped, tag = 'output window, operand 0']
    %9 = vsyncpa [#allocation4], 0
    %s10 = scalar_lea.sflag [#allocation4], 1
    %11 = vsyncpa %s10, 0
    %12 = vsyncpa [#allocation7], 0
    %13 = vsyncpa [#allocation10], 0
    %14 = vsyncpa [#allocation5], 0
    %s15 = scalar_lea.sflag [#allocation5], 1
    %16 = vsyncpa %s15, 0
    loop: start=0, step=1, limit=34
    $region2: #{tpu_custom_call.1} parent=1 // loop_pre_header
      _
    $region3: #{tpu_custom_call.1} parent=1 // loop_header
      %s18 = sphi 0, %s22
      %p19 = scmp.ge.s32.totalorder %s18, 34
      %s25 = sphi 0, %s44
      %s26 = sphi 0, %s40
      %s27 = sphi 0, %s36
      %s28 = sphi 0, %s25
      %s29 = sphi 0, %s26
      %s30 = sphi 0, %s27
      %s31 = sphi 0, %s28
      %s32 = sphi 0, %s29
      %s33 = sphi 0, %s30
      %s49 = sphi 0, %s51
      %s52 = sphi 0, %s49
      %s53 = sphi 0, %s52
      %s69 = sphi 0, %s53
      %s77 = sphi 0, %s79
      %s80 = sphi 0, %s77
      %s81 = sphi 0, %s80
      %s97 = sphi 0, %s81
      %s103 = sphi 0, %s105
      %s106 = sphi 0, %s103
      %s107 = sphi 0, %s106
      %s123 = sphi 0, %s107
      %s129 = sphi 0, %s131
      %s132 = sphi 0, %s129
      %s133 = sphi 0, %s132
      %s149 = sphi 0, %s133
      %s157 = sphi 0, %s159
      %s160 = sphi 0, %s157
      %s161 = sphi 0, %s160
      %s177 = sphi 0, %s161
    $region4: #{tpu_custom_call.1} parent=1 // loop_header_branch
      %21 = sbr.rel (%p19) target = $region8
    $region5: #{tpu_custom_call.1} parent=1 // loop_body
      %s23 = ssub.s32 %s18, 1
      %s24 = ssub.s32 %s18, 2
      %s34 = sadd.s32 1, %s27
      %p35 = scmp.ge.s32.totalorder %s34, 1
      %s36 = scalar_select %p35, 0, %s34
      %s37 = sadd.s32 1, %s26
      %s38 = scalar_select %p35, %s37, %s26
      %p39 = scmp.ge.s32.totalorder %s38, 1
      %s40 = scalar_select %p39, 0, %s38
      %s41 = sadd.s32 1, %s25
      %s42 = scalar_select %p39, %s41, %s25
      %p43 = scmp.ge.s32.totalorder %s42, 32
      %s44 = scalar_select %p43, 0, %s42
      %s45 = ssub.s32 %s25, %s44
      %s46 = ssub.s32 %s27, %s36
      %s47 = sor.u32 %s45, %s46
      %p48 = scmp.eq.s32.totalorder %s47, 0
      %s50 = sadd.s32 %s49, 1
      %s51 = scalar_select %p48, %s49, %s50
      %p54 = pneg %p48
      %p55 = scmp.eq.s32.totalorder %s18, 31
      %p56 = por %p54, %p55
      %p57 = scmp.ne.s32.totalorder %s49, %s52
      %p58 = scmp.eq.s32.totalorder %s18, 0
      %p59 = por %p57, %p58
      %p60 = scmp.ne.s32.totalorder %s49, %s52
      %p61 = scmp.eq.s32.totalorder %s23, 31
      %p62 = por %p60, %p61
      %p63 = scmp.ne.s32.totalorder %s52, %s53
      %p64 = scmp.eq.s32.totalorder %s23, 0
      %p65 = por %p63, %p64
      %p66 = scmp.ne.s32.totalorder %s52, %s53
      %p67 = scmp.eq.s32.totalorder %s24, 31
      %p68 = por %p66, %p67
      %p70 = scmp.ne.s32.totalorder %s53, %s69
      %p71 = scmp.eq.s32.totalorder %s24, 0
      %p72 = por %p70, %p71
      %s73 = ssub.s32 %s27, %s36
      %s74 = ssub.s32 %s26, %s40
      %s75 = sor.u32 %s73, %s74
      %p76 = scmp.eq.s32.totalorder %s75, 0
      %s78 = sadd.s32 %s77, 1
      %s79 = scalar_select %p76, %s77, %s78
      %p82 = pneg %p76
      %p83 = scmp.eq.s32.totalorder %s18, 31
      %p84 = por %p82, %p83
      %p85 = scmp.ne.s32.totalorder %s77, %s80
      %p86 = scmp.eq.s32.totalorder %s18, 0
      %p87 = por %p85, %p86
      %p88 = scmp.ne.s32.totalorder %s77, %s80
      %p89 = scmp.eq.s32.totalorder %s23, 31
      %p90 = por %p88, %p89
      %p91 = scmp.ne.s32.totalorder %s80, %s81
      %p92 = scmp.eq.s32.totalorder %s23, 0
      %p93 = por %p91, %p92
      %p94 = scmp.ne.s32.totalorder %s80, %s81
      %p95 = scmp.eq.s32.totalorder %s24, 31
      %p96 = por %p94, %p95
      %p98 = scmp.ne.s32.totalorder %s81, %s97
      %p99 = scmp.eq.s32.totalorder %s24, 0
      %p100 = por %p98, %p99
      %s101 = ssub.s32 %s26, %s40
      %p102 = scmp.eq.s32.totalorder %s101, 0
      %s104 = sadd.s32 %s103, 1
      %s105 = scalar_select %p102, %s103, %s104
      %p108 = pneg %p102
      %p109 = scmp.eq.s32.totalorder %s18, 31
      %p110 = por %p108, %p109
      %p111 = scmp.ne.s32.totalorder %s103, %s106
      %p112 = scmp.eq.s32.totalorder %s18, 0
      %p113 = por %p111, %p112
      %p114 = scmp.ne.s32.totalorder %s103, %s106
      %p115 = scmp.eq.s32.totalorder %s23, 31
      %p116 = por %p114, %p115
      %p117 = scmp.ne.s32.totalorder %s106, %s107
      %p118 = scmp.eq.s32.totalorder %s23, 0
      %p119 = por %p117, %p118
      %p120 = scmp.ne.s32.totalorder %s106, %s107
      %p121 = scmp.eq.s32.totalorder %s24, 31
      %p122 = por %p120, %p121
      %p124 = scmp.ne.s32.totalorder %s107, %s123
      %p125 = scmp.eq.s32.totalorder %s24, 0
      %p126 = por %p124, %p125
      %s127 = ssub.s32 %s26, %s40
      %p128 = scmp.eq.s32.totalorder %s127, 0
      %s130 = sadd.s32 %s129, 1
      %s131 = scalar_select %p128, %s129, %s130
      %p134 = pneg %p128
      %p135 = scmp.eq.s32.totalorder %s18, 31
      %p136 = por %p134, %p135
      %p137 = scmp.ne.s32.totalorder %s129, %s132
      %p138 = scmp.eq.s32.totalorder %s18, 0
      %p139 = por %p137, %p138
      %p140 = scmp.ne.s32.totalorder %s129, %s132
      %p141 = scmp.eq.s32.totalorder %s23, 31
      %p142 = por %p140, %p141
      %p143 = scmp.ne.s32.totalorder %s132, %s133
      %p144 = scmp.eq.s32.totalorder %s23, 0
      %p145 = por %p143, %p144
      %p146 = scmp.ne.s32.totalorder %s132, %s133
      %p147 = scmp.eq.s32.totalorder %s24, 31
      %p148 = por %p146, %p147
      %p150 = scmp.ne.s32.totalorder %s133, %s149
      %p151 = scmp.eq.s32.totalorder %s24, 0
      %p152 = por %p150, %p151
      %s153 = ssub.s32 %s25, %s44
      %s154 = ssub.s32 %s26, %s40
      %s155 = sor.u32 %s153, %s154
      %p156 = scmp.eq.s32.totalorder %s155, 0
      %s158 = sadd.s32 %s157, 1
      %s159 = scalar_select %p156, %s157, %s158
      %p162 = pneg %p156
      %p163 = scmp.eq.s32.totalorder %s18, 31
      %p164 = por %p162, %p163
      %p165 = scmp.ne.s32.totalorder %s157, %s160
      %p166 = scmp.eq.s32.totalorder %s18, 0
      %p167 = por %p165, %p166
      %p168 = scmp.ne.s32.totalorder %s157, %s160
      %p169 = scmp.eq.s32.totalorder %s23, 31
      %p170 = por %p168, %p169
      %p171 = scmp.ne.s32.totalorder %s160, %s161
      %p172 = scmp.eq.s32.totalorder %s23, 0
      %p173 = por %p171, %p172
      %p174 = scmp.ne.s32.totalorder %s160, %s161
      %p175 = scmp.eq.s32.totalorder %s24, 31
      %p176 = por %p174, %p175
      %p178 = scmp.ne.s32.totalorder %s161, %s177
      %p179 = scmp.eq.s32.totalorder %s24, 0
      %p180 = por %p178, %p179
      %p181 = scmp.le.s32.totalorder 1, %s18
      %p182 = scmp.lt.s32.totalorder %s18, 33
      %p183 = pnand %p181, %p182
      %p184 = pneg %p183
      // Predicated region
      $region9: #{tpu_custom_call.1} parent=5 // pred_check
        _
      $region10: #{tpu_custom_call.1} parent=5 // pred_check_branch
        %186 = sbr.rel (%p183) target = $region12
      $region11: #{tpu_custom_call.1} parent=5 // pred_region
        %s187 = ssub.s32 %s18, 1
        // Predicated region
        $region13: #{tpu_custom_call.1} parent=11 // pred_check
          %p188 = pneg %p93
        $region14: #{tpu_custom_call.1} parent=11 // pred_check_branch
          %190 = sbr.rel (%p188) target = $region16
        $region15: #{tpu_custom_call.1} parent=11 // pred_region
          %s191 = smul.u32 64, %s30
          %s193 = ssub.s32 4096, 4096
          %194 = vsyncadd [#allocation7], %s193
          %s195 = sadd.s32 %s29, %s191
          %s196 = smul.addr %s195, 64
          %s197 = scalar_lea.hbm %s1, %s196
          %s198 = sshll.u32 [#allocation6], 4
          %s199 = int_to_ptr.vmem [resolvable:$true] %s198
          %204 = dma.hbm_to_vmem [thread:$0]  %s197, 4096, %s199, [#allocation7], 64, 64, 4
        $region16: #{tpu_custom_call.1} parent=11 // pred_fallthru
          _
        // Predicated region
        $region17: #{tpu_custom_call.1} parent=11 // pred_check
          %p205 = pneg %p119
        $region18: #{tpu_custom_call.1} parent=11 // pred_check_branch
          %207 = sbr.rel (%p205) target = $region20
        $region19: #{tpu_custom_call.1} parent=11 // pred_region
          %s209 = ssub.s32 16, 16
          %210 = vsyncadd [#allocation7], %s209
          %s211 = smul.addr %s29, 16
          %s212 = scalar_lea.hbm %s2, %s211
          %s214 = sshll.u32 [#allocation8], 4
          %s215 = int_to_ptr.vmem [resolvable:$true] %s214
          %217 = dma.hbm_to_vmem [thread:$0]  %s212, 16, %s215, [#allocation7]
        $region20: #{tpu_custom_call.1} parent=11 // pred_fallthru
          _
        // Predicated region
        $region21: #{tpu_custom_call.1} parent=11 // pred_check
          %p218 = pneg %p145
        $region22: #{tpu_custom_call.1} parent=11 // pred_check_branch
          %220 = sbr.rel (%p218) target = $region24
        $region23: #{tpu_custom_call.1} parent=11 // pred_region
          %s222 = ssub.s32 16, 16
          %223 = vsyncadd [#allocation10], %s222
          %s224 = smul.addr %s29, 16
          %s225 = scalar_lea.hbm %s3, %s224
          %s227 = sshll.u32 [#allocation9], 4
          %s228 = int_to_ptr.vmem [resolvable:$true] %s227
          %230 = dma.hbm_to_vmem [thread:$0]  %s225, 16, %s228, [#allocation10]
        $region24: #{tpu_custom_call.1} parent=11 // pred_fallthru
          _
      $region12: #{tpu_custom_call.1} parent=5 // pred_fallthru
        _
      %p231 = scmp.lt.s32.totalorder %s18, 32
      // Predicated region
      $region25: #{tpu_custom_call.1} parent=5 // pred_check
        %p232 = pneg %p231
      $region26: #{tpu_custom_call.1} parent=5 // pred_check_branch
        %234 = sbr.rel (%p232) target = $region28
      $region27: #{tpu_custom_call.1} parent=5 // pred_region
        // Predicated region
        $region29: #{tpu_custom_call.1} parent=27 // pred_check
          %p235 = pneg %p59
        $region30: #{tpu_custom_call.1} parent=27 // pred_check_branch
          %237 = sbr.rel (%p235) target = $region32
        $region31: #{tpu_custom_call.1} parent=27 // pred_region
          %s238 = sand.u32 %s49, 1
          %s239 = scalar_lea.sflag [#allocation4], %s238
          %s240 = sand.u32 %s49, 1
          %s241 = smul.addr %s240, 512
          %s242 = scalar_lea.vmem [#allocation3], %s241
          %s243 = smul.u32 32, %s25
          %s244 = smul.u32 4, %s27
          %s246 = ssub.s32 8192, 8192
          %247 = vsyncadd %s239, %s246
          %s248 = smul.addr %s243, 4
          %s249 = sadd.s32 %s244, %s248
          %s250 = smul.addr %s249, 64
          %s251 = scalar_lea.hbm %s0, %s250
          %s252 = sshll.u32 %s242, 4
          %s253 = int_to_ptr.vmem [resolvable:$true] %s252
          %258 = dma.hbm_to_vmem [thread:$0]  %s251, 8192, %s253, %s239, 256, 256, 16
        $region32: #{tpu_custom_call.1} parent=27 // pred_fallthru
          _
      $region28: #{tpu_custom_call.1} parent=5 // pred_fallthru
        _
      %p259 = scmp.le.s32.totalorder 1, %s18
      %p260 = scmp.lt.s32.totalorder %s18, 33
      %p261 = pnand %p259, %p260
      %p262 = pneg %p261
      // Predicated region
      $region33: #{tpu_custom_call.1} parent=5 // pred_check
        _
      $region34: #{tpu_custom_call.1} parent=5 // pred_check_branch
        %264 = sbr.rel (%p261) target = $region36
      $region35: #{tpu_custom_call.1} parent=5 // pred_region
        %s265 = ssub.s32 %s18, 1
        %s266 = sand.u32 %s52, 1
        %s267 = scalar_lea.sflag [#allocation4], %s266
        %s268 = sand.u32 %s52, 1
        %s269 = smul.addr %s268, 512
        %s270 = scalar_lea.vmem [#allocation3], %s269
        // Predicated region
        $region37: #{tpu_custom_call.1} parent=35 // pred_check
          %p271 = pneg %p65
        $region38: #{tpu_custom_call.1} parent=35 // pred_check_branch
          %273 = sbr.rel (%p271) target = $region40
        $region39: #{tpu_custom_call.1} parent=35 // pred_region
          %274 = dma.done %s267, 8192
        $region40: #{tpu_custom_call.1} parent=35 // pred_fallthru
          _
        // Predicated region
        $region41: #{tpu_custom_call.1} parent=35 // pred_check
          %p275 = pneg %p93
        $region42: #{tpu_custom_call.1} parent=35 // pred_check_branch
          %277 = sbr.rel (%p275) target = $region44
        $region43: #{tpu_custom_call.1} parent=35 // pred_region
          %278 = dma.done [#allocation7], 4096
        $region44: #{tpu_custom_call.1} parent=35 // pred_fallthru
          _
        // Predicated region
        $region45: #{tpu_custom_call.1} parent=35 // pred_check
          %p279 = pneg %p119
        $region46: #{tpu_custom_call.1} parent=35 // pred_check_branch
          %281 = sbr.rel (%p279) target = $region48
        $region47: #{tpu_custom_call.1} parent=35 // pred_region
          %282 = dma.done [#allocation7], 16
        $region48: #{tpu_custom_call.1} parent=35 // pred_fallthru
          _
        // Predicated region
        $region49: #{tpu_custom_call.1} parent=35 // pred_check
          %p283 = pneg %p145
        $region50: #{tpu_custom_call.1} parent=35 // pred_check_branch
          %285 = sbr.rel (%p283) target = $region52
        $region51: #{tpu_custom_call.1} parent=35 // pred_region
          %286 = dma.done [#allocation10], 16
        $region52: #{tpu_custom_call.1} parent=35 // pred_fallthru
          _
        %s287 = sand.u32 %s52, 1
        %s288 = scalar_lea.sflag [#allocation4], %s287
        %s289 = sand.u32 %s52, 1
        %s290 = smul.addr %s289, 512
        %s291 = scalar_lea.vmem [#allocation3], %s290
        %p292 = pneg %p65
        %p293 = pneg %p62
        %p294 = pneg %p93
        %p295 = pneg %p90
        %p296 = pneg %p119
        %p297 = pneg %p116
        %p298 = pneg %p145
        %p299 = pneg %p142
        %p300 = pneg %p173
        %p301 = pneg %p170
        %s302 = sand.u32 %s160, 1
        %s303 = scalar_lea.sflag [#allocation5], %s302
        %s304 = sand.u32 %s160, 1
        %s305 = smul.addr %s304, 256
        %s306 = scalar_lea.vmem [#allocation11], %s305
        %s307 = smul.u32 32, %s28
        %s308 = smul.u32 4, %s30
        %s309 = smul.u32 64, %s30
        %s310 = smul.u32 32, %s28
        %p312 = scmp.eq.s32.totalorder %s30, 0
        // Predicated region
        $region53: #{tpu_custom_call.1} parent=35 // pred_check
          %p313 = pneg %p312
        $region54: #{tpu_custom_call.1} parent=35 // pred_check_branch
          %315 = sbr.rel (%p313) target = $region56
        $region55: #{tpu_custom_call.1} parent=35 // pred_region
          %316 = vst [vmem:[#allocation2] sm:$0xff] 0.0
          %317 = vst [vmem:[#allocation2 + $0x8] sm:$0xff] 0.0
          %318 = vst [vmem:[#allocation2 + $0x10] sm:$0xff] 0.0
          %319 = vst [vmem:[#allocation2 + $0x18] sm:$0xff] 0.0
          %320 = vst [vmem:[#allocation2 + $0x20] sm:$0xff] 0.0
          %321 = vst [vmem:[#allocation2 + $0x28] sm:$0xff] 0.0
          %322 = vst [vmem:[#allocation2 + $0x30] sm:$0xff] 0.0
          %323 = vst [vmem:[#allocation2 + $0x38] sm:$0xff] 0.0
          %324 = vst [vmem:[#allocation2 + $0x40] sm:$0xff] 0.0
          %325 = vst [vmem:[#allocation2 + $0x48] sm:$0xff] 0.0
          %326 = vst [vmem:[#allocation2 + $0x50] sm:$0xff] 0.0
          %327 = vst [vmem:[#allocation2 + $0x58] sm:$0xff] 0.0
          %328 = vst [vmem:[#allocation2 + $0x60] sm:$0xff] 0.0
          %329 = vst [vmem:[#allocation2 + $0x68] sm:$0xff] 0.0
          %330 = vst [vmem:[#allocation2 + $0x70] sm:$0xff] 0.0
          %331 = vst [vmem:[#allocation2 + $0x78] sm:$0xff] 0.0
          %332 = vst [vmem:[#allocation2 + $0x80] sm:$0xff] 0.0
          %333 = vst [vmem:[#allocation2 + $0x88] sm:$0xff] 0.0
          %334 = vst [vmem:[#allocation2 + $0x90] sm:$0xff] 0.0
          %335 = vst [vmem:[#allocation2 + $0x98] sm:$0xff] 0.0
          %336 = vst [vmem:[#allocation2 + $0xa0] sm:$0xff] 0.0
          %337 = vst [vmem:[#allocation2 + $0xa8] sm:$0xff] 0.0
          %338 = vst [vmem:[#allocation2 + $0xb0] sm:$0xff] 0.0
          %339 = vst [vmem:[#allocation2 + $0xb8] sm:$0xff] 0.0
          %340 = vst [vmem:[#allocation2 + $0xc0] sm:$0xff] 0.0
          %341 = vst [vmem:[#allocation2 + $0xc8] sm:$0xff] 0.0
          %342 = vst [vmem:[#allocation2 + $0xd0] sm:$0xff] 0.0
          %343 = vst [vmem:[#allocation2 + $0xd8] sm:$0xff] 0.0
          %344 = vst [vmem:[#allocation2 + $0xe0] sm:$0xff] 0.0
          %345 = vst [vmem:[#allocation2 + $0xe8] sm:$0xff] 0.0
          %346 = vst [vmem:[#allocation2 + $0xf0] sm:$0xff] 0.0
          %347 = vst [vmem:[#allocation2 + $0xf8] sm:$0xff] 0.0
        $region56: #{tpu_custom_call.1} parent=35 // pred_fallthru
          _
        %v348 = vld [vmem:[#allocation2] sm:$0xff]
        %v349 = vld [vmem:[#allocation2 + $0x8] sm:$0xff]
        %v350 = vld [vmem:[#allocation2 + $0x10] sm:$0xff]
        %v351 = vld [vmem:[#allocation2 + $0x18] sm:$0xff]
        %v352 = vld [vmem:[#allocation2 + $0x20] sm:$0xff]
        %v353 = vld [vmem:[#allocation2 + $0x28] sm:$0xff]
        %v354 = vld [vmem:[#allocation2 + $0x30] sm:$0xff]
        %v355 = vld [vmem:[#allocation2 + $0x38] sm:$0xff]
        %v356 = vld [vmem:[#allocation2 + $0x40] sm:$0xff]
        %v357 = vld [vmem:[#allocation2 + $0x48] sm:$0xff]
        %v358 = vld [vmem:[#allocation2 + $0x50] sm:$0xff]
        %v359 = vld [vmem:[#allocation2 + $0x58] sm:$0xff]
        %v360 = vld [vmem:[#allocation2 + $0x60] sm:$0xff]
        %v361 = vld [vmem:[#allocation2 + $0x68] sm:$0xff]
        %v362 = vld [vmem:[#allocation2 + $0x70] sm:$0xff]
        %v363 = vld [vmem:[#allocation2 + $0x78] sm:$0xff]
        %v364 = vld [vmem:[#allocation2 + $0x80] sm:$0xff]
        %v365 = vld [vmem:[#allocation2 + $0x88] sm:$0xff]
        %v366 = vld [vmem:[#allocation2 + $0x90] sm:$0xff]
        %v367 = vld [vmem:[#allocation2 + $0x98] sm:$0xff]
        %v368 = vld [vmem:[#allocation2 + $0xa0] sm:$0xff]
        %v369 = vld [vmem:[#allocation2 + $0xa8] sm:$0xff]
        %v370 = vld [vmem:[#allocation2 + $0xb0] sm:$0xff]
        %v371 = vld [vmem:[#allocation2 + $0xb8] sm:$0xff]
        %v372 = vld [vmem:[#allocation2 + $0xc0] sm:$0xff]
        %v373 = vld [vmem:[#allocation2 + $0xc8] sm:$0xff]
        %v374 = vld [vmem:[#allocation2 + $0xd0] sm:$0xff]
        %v375 = vld [vmem:[#allocation2 + $0xd8] sm:$0xff]
        %v376 = vld [vmem:[#allocation2 + $0xe0] sm:$0xff]
        %v377 = vld [vmem:[#allocation2 + $0xe8] sm:$0xff]
        %v378 = vld [vmem:[#allocation2 + $0xf0] sm:$0xff]
        %v379 = vld [vmem:[#allocation2 + $0xf8] sm:$0xff]
        %v380 = vld [vmem:[%s270] sm:$0xff]
        %v381 = vld [vmem:[%s270 + $0x8] sm:$0xff]
        %v382 = vld [vmem:[%s270 + $0x10] sm:$0xff]
        %v383 = vld [vmem:[%s270 + $0x18] sm:$0xff]
        %v384 = vld [vmem:[%s270 + $0x20] sm:$0xff]
        %v385 = vld [vmem:[%s270 + $0x28] sm:$0xff]
        %v386 = vld [vmem:[%s270 + $0x30] sm:$0xff]
        %v387 = vld [vmem:[%s270 + $0x38] sm:$0xff]
        %v388 = vld [vmem:[%s270 + $0x40] sm:$0xff]
        %v389 = vld [vmem:[%s270 + $0x48] sm:$0xff]
        %v390 = vld [vmem:[%s270 + $0x50] sm:$0xff]
        %v391 = vld [vmem:[%s270 + $0x58] sm:$0xff]
        %v392 = vld [vmem:[%s270 + $0x60] sm:$0xff]
        %v393 = vld [vmem:[%s270 + $0x68] sm:$0xff]
        %v394 = vld [vmem:[%s270 + $0x70] sm:$0xff]
        %v395 = vld [vmem:[%s270 + $0x78] sm:$0xff]
        %v396 = vld [vmem:[%s270 + $0x80] sm:$0xff]
        %v397 = vld [vmem:[%s270 + $0x88] sm:$0xff]
        %v398 = vld [vmem:[%s270 + $0x90] sm:$0xff]
        %v399 = vld [vmem:[%s270 + $0x98] sm:$0xff]
        %v400 = vld [vmem:[%s270 + $0xa0] sm:$0xff]
        %v401 = vld [vmem:[%s270 + $0xa8] sm:$0xff]
        %v402 = vld [vmem:[%s270 + $0xb0] sm:$0xff]
        %v403 = vld [vmem:[%s270 + $0xb8] sm:$0xff]
        %v404 = vld [vmem:[%s270 + $0xc0] sm:$0xff]
        %v405 = vld [vmem:[%s270 + $0xc8] sm:$0xff]
        %v406 = vld [vmem:[%s270 + $0xd0] sm:$0xff]
        %v407 = vld [vmem:[%s270 + $0xd8] sm:$0xff]
        %v408 = vld [vmem:[%s270 + $0xe0] sm:$0xff]
        %v409 = vld [vmem:[%s270 + $0xe8] sm:$0xff]
        %v410 = vld [vmem:[%s270 + $0xf0] sm:$0xff]
        %v411 = vld [vmem:[%s270 + $0xf8] sm:$0xff]
        %v412 = vld [vmem:[%s270 + $0x100] sm:$0xff]
        %v413 = vld [vmem:[%s270 + $0x108] sm:$0xff]
        %v414 = vld [vmem:[%s270 + $0x110] sm:$0xff]
        %v415 = vld [vmem:[%s270 + $0x118] sm:$0xff]
        %v416 = vld [vmem:[%s270 + $0x120] sm:$0xff]
        %v417 = vld [vmem:[%s270 + $0x128] sm:$0xff]
        %v418 = vld [vmem:[%s270 + $0x130] sm:$0xff]
        %v419 = vld [vmem:[%s270 + $0x138] sm:$0xff]
        %v420 = vld [vmem:[%s270 + $0x140] sm:$0xff]
        %v421 = vld [vmem:[%s270 + $0x148] sm:$0xff]
        %v422 = vld [vmem:[%s270 + $0x150] sm:$0xff]
        %v423 = vld [vmem:[%s270 + $0x158] sm:$0xff]
        %v424 = vld [vmem:[%s270 + $0x160] sm:$0xff]
        %v425 = vld [vmem:[%s270 + $0x168] sm:$0xff]
        %v426 = vld [vmem:[%s270 + $0x170] sm:$0xff]
        %v427 = vld [vmem:[%s270 + $0x178] sm:$0xff]
        %v428 = vld [vmem:[%s270 + $0x180] sm:$0xff]
        %v429 = vld [vmem:[%s270 + $0x188] sm:$0xff]
        %v430 = vld [vmem:[%s270 + $0x190] sm:$0xff]
        %v431 = vld [vmem:[%s270 + $0x198] sm:$0xff]
        %v432 = vld [vmem:[%s270 + $0x1a0] sm:$0xff]
        %v433 = vld [vmem:[%s270 + $0x1a8] sm:$0xff]
        %v434 = vld [vmem:[%s270 + $0x1b0] sm:$0xff]
        %v435 = vld [vmem:[%s270 + $0x1b8] sm:$0xff]
        %v436 = vld [vmem:[%s270 + $0x1c0] sm:$0xff]
        %v437 = vld [vmem:[%s270 + $0x1c8] sm:$0xff]
        %v438 = vld [vmem:[%s270 + $0x1d0] sm:$0xff]
        %v439 = vld [vmem:[%s270 + $0x1d8] sm:$0xff]
        %v440 = vld [vmem:[%s270 + $0x1e0] sm:$0xff]
        %v441 = vld [vmem:[%s270 + $0x1e8] sm:$0xff]
        %v442 = vld [vmem:[%s270 + $0x1f0] sm:$0xff]
        %v443 = vld [vmem:[%s270 + $0x1f8] sm:$0xff]
        %v444 = vld [vmem:[#allocation6] sm:$0xf]
        %v445 = vld [vmem:[#allocation6 + $0x4] sm:$0xf]
        %v446 = vld [vmem:[#allocation6 + $0x8] sm:$0xf]
        %v447 = vld [vmem:[#allocation6 + $0xc] sm:$0xf]
        %v448 = vld [vmem:[#allocation6 + $0x10] sm:$0xf]
        %v449 = vld [vmem:[#allocation6 + $0x14] sm:$0xf]
        %v450 = vld [vmem:[#allocation6 + $0x18] sm:$0xf]
        %v451 = vld [vmem:[#allocation6 + $0x1c] sm:$0xf]
        %v452 = vld [vmem:[#allocation6 + $0x20] sm:$0xf]
        %v453 = vld [vmem:[#allocation6 + $0x24] sm:$0xf]
        %v454 = vld [vmem:[#allocation6 + $0x28] sm:$0xf]
        %v455 = vld [vmem:[#allocation6 + $0x2c] sm:$0xf]
        %v456 = vld [vmem:[#allocation6 + $0x30] sm:$0xf]
        %v457 = vld [vmem:[#allocation6 + $0x34] sm:$0xf]
        %v458 = vld [vmem:[#allocation6 + $0x38] sm:$0xf]
        %v459 = vld [vmem:[#allocation6 + $0x3c] sm:$0xf]
        %v460 = vld [vmem:[#allocation6 + $0x40] sm:$0xf]
        %v461 = vld [vmem:[#allocation6 + $0x44] sm:$0xf]
        %v462 = vld [vmem:[#allocation6 + $0x48] sm:$0xf]
        %v463 = vld [vmem:[#allocation6 + $0x4c] sm:$0xf]
        %v464 = vld [vmem:[#allocation6 + $0x50] sm:$0xf]
        %v465 = vld [vmem:[#allocation6 + $0x54] sm:$0xf]
        %v466 = vld [vmem:[#allocation6 + $0x58] sm:$0xf]
        %v467 = vld [vmem:[#allocation6 + $0x5c] sm:$0xf]
        %v468 = vld [vmem:[#allocation6 + $0x60] sm:$0xf]
        %v469 = vld [vmem:[#allocation6 + $0x64] sm:$0xf]
        %v470 = vld [vmem:[#allocation6 + $0x68] sm:$0xf]
        %v471 = vld [vmem:[#allocation6 + $0x6c] sm:$0xf]
        %v472 = vld [vmem:[#allocation6 + $0x70] sm:$0xf]
        %v473 = vld [vmem:[#allocation6 + $0x74] sm:$0xf]
        %v474 = vld [vmem:[#allocation6 + $0x78] sm:$0xf]
        %v475 = vld [vmem:[#allocation6 + $0x7c] sm:$0xf]
        %v476 = vld [vmem:[#allocation6 + $0x80] sm:$0xf]
        %v477 = vld [vmem:[#allocation6 + $0x84] sm:$0xf]
        %v478 = vld [vmem:[#allocation6 + $0x88] sm:$0xf]
        %v479 = vld [vmem:[#allocation6 + $0x8c] sm:$0xf]
        %v480 = vld [vmem:[#allocation6 + $0x90] sm:$0xf]
        %v481 = vld [vmem:[#allocation6 + $0x94] sm:$0xf]
        %v482 = vld [vmem:[#allocation6 + $0x98] sm:$0xf]
        %v483 = vld [vmem:[#allocation6 + $0x9c] sm:$0xf]
        %v484 = vld [vmem:[#allocation6 + $0xa0] sm:$0xf]
        %v485 = vld [vmem:[#allocation6 + $0xa4] sm:$0xf]
        %v486 = vld [vmem:[#allocation6 + $0xa8] sm:$0xf]
        %v487 = vld [vmem:[#allocation6 + $0xac] sm:$0xf]
        %v488 = vld [vmem:[#allocation6 + $0xb0] sm:$0xf]
        %v489 = vld [vmem:[#allocation6 + $0xb4] sm:$0xf]
        %v490 = vld [vmem:[#allocation6 + $0xb8] sm:$0xf]
        %v491 = vld [vmem:[#allocation6 + $0xbc] sm:$0xf]
        %v492 = vld [vmem:[#allocation6 + $0xc0] sm:$0xf]
        %v493 = vld [vmem:[#allocation6 + $0xc4] sm:$0xf]
        %v494 = vld [vmem:[#allocation6 + $0xc8] sm:$0xf]
        %v495 = vld [vmem:[#allocation6 + $0xcc] sm:$0xf]
        %v496 = vld [vmem:[#allocation6 + $0xd0] sm:$0xf]
        %v497 = vld [vmem:[#allocation6 + $0xd4] sm:$0xf]
        %v498 = vld [vmem:[#allocation6 + $0xd8] sm:$0xf]
        %v499 = vld [vmem:[#allocation6 + $0xdc] sm:$0xf]
        %v500 = vld [vmem:[#allocation6 + $0xe0] sm:$0xf]
        %v501 = vld [vmem:[#allocation6 + $0xe4] sm:$0xf]
        %v502 = vld [vmem:[#allocation6 + $0xe8] sm:$0xf]
        %v503 = vld [vmem:[#allocation6 + $0xec] sm:$0xf]
        %v504 = vld [vmem:[#allocation6 + $0xf0] sm:$0xf]
        %v505 = vld [vmem:[#allocation6 + $0xf4] sm:$0xf]
        %v506 = vld [vmem:[#allocation6 + $0xf8] sm:$0xf]
        %v507 = vld [vmem:[#allocation6 + $0xfc] sm:$0xf]
        %v572 = vunpack.c.l.b16 %v380
        %v573 = vunpack.c.h.b16 %v380
        %v574 = vunpack.c.l.b16 %v381
        %v575 = vunpack.c.h.b16 %v381
        %v576 = vunpack.c.l.b16 %v382
        %v577 = vunpack.c.h.b16 %v382
        %v578 = vunpack.c.l.b16 %v383
        %v579 = vunpack.c.h.b16 %v383
        %v580 = vunpack.c.l.b16 %v384
        %v581 = vunpack.c.h.b16 %v384
        %v582 = vunpack.c.l.b16 %v385
        %v583 = vunpack.c.h.b16 %v385
        %v584 = vunpack.c.l.b16 %v386
        %v585 = vunpack.c.h.b16 %v386
        %v586 = vunpack.c.l.b16 %v387
        %v587 = vunpack.c.h.b16 %v387
        %v588 = vunpack.c.l.b16 %v388
        %v589 = vunpack.c.h.b16 %v388
        %v590 = vunpack.c.l.b16 %v389
        %v591 = vunpack.c.h.b16 %v389
        %v592 = vunpack.c.l.b16 %v390
        %v593 = vunpack.c.h.b16 %v390
        %v594 = vunpack.c.l.b16 %v391
        %v595 = vunpack.c.h.b16 %v391
        %v596 = vunpack.c.l.b16 %v392
        %v597 = vunpack.c.h.b16 %v392
        %v598 = vunpack.c.l.b16 %v393
        %v599 = vunpack.c.h.b16 %v393
        %v600 = vunpack.c.l.b16 %v394
        %v601 = vunpack.c.h.b16 %v394
        %v602 = vunpack.c.l.b16 %v395
        %v603 = vunpack.c.h.b16 %v395
        %v604 = vunpack.c.l.b16 %v396
        %v605 = vunpack.c.h.b16 %v396
        %v606 = vunpack.c.l.b16 %v397
        %v607 = vunpack.c.h.b16 %v397
        %v608 = vunpack.c.l.b16 %v398
        %v609 = vunpack.c.h.b16 %v398
        %v610 = vunpack.c.l.b16 %v399
        %v611 = vunpack.c.h.b16 %v399
        %v612 = vunpack.c.l.b16 %v400
        %v613 = vunpack.c.h.b16 %v400
        %v614 = vunpack.c.l.b16 %v401
        %v615 = vunpack.c.h.b16 %v401
        %v616 = vunpack.c.l.b16 %v402
        %v617 = vunpack.c.h.b16 %v402
        %v618 = vunpack.c.l.b16 %v403
        %v619 = vunpack.c.h.b16 %v403
        %v620 = vunpack.c.l.b16 %v404
        %v621 = vunpack.c.h.b16 %v404
        %v622 = vunpack.c.l.b16 %v405
        %v623 = vunpack.c.h.b16 %v405
        %v624 = vunpack.c.l.b16 %v406
        %v625 = vunpack.c.h.b16 %v406
        %v626 = vunpack.c.l.b16 %v407
        %v627 = vunpack.c.h.b16 %v407
        %v628 = vunpack.c.l.b16 %v408
        %v629 = vunpack.c.h.b16 %v408
        %v630 = vunpack.c.l.b16 %v409
        %v631 = vunpack.c.h.b16 %v409
        %v632 = vunpack.c.l.b16 %v410
        %v633 = vunpack.c.h.b16 %v410
        %v634 = vunpack.c.l.b16 %v411
        %v635 = vunpack.c.h.b16 %v411
        %v636 = vunpack.c.l.b16 %v412
        %v637 = vunpack.c.h.b16 %v412
        %v638 = vunpack.c.l.b16 %v413
        %v639 = vunpack.c.h.b16 %v413
        %v640 = vunpack.c.l.b16 %v414
        %v641 = vunpack.c.h.b16 %v414
        %v642 = vunpack.c.l.b16 %v415
        %v643 = vunpack.c.h.b16 %v415
        %v644 = vunpack.c.l.b16 %v416
        %v645 = vunpack.c.h.b16 %v416
        %v646 = vunpack.c.l.b16 %v417
        %v647 = vunpack.c.h.b16 %v417
        %v648 = vunpack.c.l.b16 %v418
        %v649 = vunpack.c.h.b16 %v418
        %v650 = vunpack.c.l.b16 %v419
        %v651 = vunpack.c.h.b16 %v419
        %v652 = vunpack.c.l.b16 %v420
        %v653 = vunpack.c.h.b16 %v420
        %v654 = vunpack.c.l.b16 %v421
        %v655 = vunpack.c.h.b16 %v421
        %v656 = vunpack.c.l.b16 %v422
        %v657 = vunpack.c.h.b16 %v422
        %v658 = vunpack.c.l.b16 %v423
        %v659 = vunpack.c.h.b16 %v423
        %v660 = vunpack.c.l.b16 %v424
        %v661 = vunpack.c.h.b16 %v424
        %v662 = vunpack.c.l.b16 %v425
        %v663 = vunpack.c.h.b16 %v425
        %v664 = vunpack.c.l.b16 %v426
        %v665 = vunpack.c.h.b16 %v426
        %v666 = vunpack.c.l.b16 %v427
        %v667 = vunpack.c.h.b16 %v427
        %v668 = vunpack.c.l.b16 %v428
        %v669 = vunpack.c.h.b16 %v428
        %v670 = vunpack.c.l.b16 %v429
        %v671 = vunpack.c.h.b16 %v429
        %v672 = vunpack.c.l.b16 %v430
        %v673 = vunpack.c.h.b16 %v430
        %v674 = vunpack.c.l.b16 %v431
        %v675 = vunpack.c.h.b16 %v431
        %v676 = vunpack.c.l.b16 %v432
        %v677 = vunpack.c.h.b16 %v432
        %v678 = vunpack.c.l.b16 %v433
        %v679 = vunpack.c.h.b16 %v433
        %v680 = vunpack.c.l.b16 %v434
        %v681 = vunpack.c.h.b16 %v434
        %v682 = vunpack.c.l.b16 %v435
        %v683 = vunpack.c.h.b16 %v435
        %v684 = vunpack.c.l.b16 %v436
        %v685 = vunpack.c.h.b16 %v436
        %v686 = vunpack.c.l.b16 %v437
        %v687 = vunpack.c.h.b16 %v437
        %v688 = vunpack.c.l.b16 %v438
        %v689 = vunpack.c.h.b16 %v438
        %v690 = vunpack.c.l.b16 %v439
        %v691 = vunpack.c.h.b16 %v439
        %v692 = vunpack.c.l.b16 %v440
        %v693 = vunpack.c.h.b16 %v440
        %v694 = vunpack.c.l.b16 %v441
        %v695 = vunpack.c.h.b16 %v441
        %v696 = vunpack.c.l.b16 %v442
        %v697 = vunpack.c.h.b16 %v442
        %v698 = vunpack.c.l.b16 %v443
        %v699 = vunpack.c.h.b16 %v443
        %v700 = vpack.c.b16 %v576, %v572
        %v701 = vpack.c.b16 %v577, %v573
        %v702 = vpack.c.b16 %v578, %v574
        %v703 = vpack.c.b16 %v579, %v575
        %v704 = vpack.c.b16 %v584, %v580
        %v705 = vpack.c.b16 %v585, %v581
        %v706 = vpack.c.b16 %v586, %v582
        %v707 = vpack.c.b16 %v587, %v583
        %v708 = vpack.c.b16 %v592, %v588
        %v709 = vpack.c.b16 %v593, %v589
        %v710 = vpack.c.b16 %v594, %v590
        %v711 = vpack.c.b16 %v595, %v591
        %v712 = vpack.c.b16 %v600, %v596
        %v713 = vpack.c.b16 %v601, %v597
        %v714 = vpack.c.b16 %v602, %v598
        %v715 = vpack.c.b16 %v603, %v599
        %v716 = vpack.c.b16 %v608, %v604
        %v717 = vpack.c.b16 %v609, %v605
        %v718 = vpack.c.b16 %v610, %v606
        %v719 = vpack.c.b16 %v611, %v607
        %v720 = vpack.c.b16 %v616, %v612
        %v721 = vpack.c.b16 %v617, %v613
        %v722 = vpack.c.b16 %v618, %v614
        %v723 = vpack.c.b16 %v619, %v615
        %v724 = vpack.c.b16 %v624, %v620
        %v725 = vpack.c.b16 %v625, %v621
        %v726 = vpack.c.b16 %v626, %v622
        %v727 = vpack.c.b16 %v627, %v623
        %v728 = vpack.c.b16 %v632, %v628
        %v729 = vpack.c.b16 %v633, %v629
        %v730 = vpack.c.b16 %v634, %v630
        %v731 = vpack.c.b16 %v635, %v631
        %v732 = vpack.c.b16 %v640, %v636
        %v733 = vpack.c.b16 %v641, %v637
        %v734 = vpack.c.b16 %v642, %v638
        %v735 = vpack.c.b16 %v643, %v639
        %v736 = vpack.c.b16 %v648, %v644
        %v737 = vpack.c.b16 %v649, %v645
        %v738 = vpack.c.b16 %v650, %v646
        %v739 = vpack.c.b16 %v651, %v647
        %v740 = vpack.c.b16 %v656, %v652
        %v741 = vpack.c.b16 %v657, %v653
        %v742 = vpack.c.b16 %v658, %v654
        %v743 = vpack.c.b16 %v659, %v655
        %v744 = vpack.c.b16 %v664, %v660
        %v745 = vpack.c.b16 %v665, %v661
        %v746 = vpack.c.b16 %v666, %v662
        %v747 = vpack.c.b16 %v667, %v663
        %v748 = vpack.c.b16 %v672, %v668
        %v749 = vpack.c.b16 %v673, %v669
        %v750 = vpack.c.b16 %v674, %v670
        %v751 = vpack.c.b16 %v675, %v671
        %v752 = vpack.c.b16 %v680, %v676
        %v753 = vpack.c.b16 %v681, %v677
        %v754 = vpack.c.b16 %v682, %v678
        %v755 = vpack.c.b16 %v683, %v679
        %v756 = vpack.c.b16 %v688, %v684
        %v757 = vpack.c.b16 %v689, %v685
        %v758 = vpack.c.b16 %v690, %v686
        %v759 = vpack.c.b16 %v691, %v687
        %v760 = vpack.c.b16 %v696, %v692
        %v761 = vpack.c.b16 %v697, %v693
        %v762 = vpack.c.b16 %v698, %v694
        %v763 = vpack.c.b16 %v699, %v695
        %v892 = vunpack.c.l.b16 %v444
        %v893 = vunpack.c.l.b16 %v445
        %v894 = vunpack.c.l.b16 %v446
        %v895 = vunpack.c.l.b16 %v447
        %v896 = vunpack.c.l.b16 %v448
        %v897 = vunpack.c.l.b16 %v449
        %v898 = vunpack.c.l.b16 %v450
        %v899 = vunpack.c.l.b16 %v451
        %v900 = vunpack.c.l.b16 %v452
        %v901 = vunpack.c.l.b16 %v453
        %v902 = vunpack.c.l.b16 %v454
        %v903 = vunpack.c.l.b16 %v455
        %v904 = vunpack.c.l.b16 %v456
        %v905 = vunpack.c.l.b16 %v457
        %v906 = vunpack.c.l.b16 %v458
        %v907 = vunpack.c.l.b16 %v459
        %v908 = vunpack.c.l.b16 %v460
        %v909 = vunpack.c.l.b16 %v461
        %v910 = vunpack.c.l.b16 %v462
        %v911 = vunpack.c.l.b16 %v463
        %v912 = vunpack.c.l.b16 %v464
        %v913 = vunpack.c.l.b16 %v465
        %v914 = vunpack.c.l.b16 %v466
        %v915 = vunpack.c.l.b16 %v467
        %v916 = vunpack.c.l.b16 %v468
        %v917 = vunpack.c.l.b16 %v469
        %v918 = vunpack.c.l.b16 %v470
        %v919 = vunpack.c.l.b16 %v471
        %v920 = vunpack.c.l.b16 %v472
        %v921 = vunpack.c.l.b16 %v473
        %v922 = vunpack.c.l.b16 %v474
        %v923 = vunpack.c.l.b16 %v475
        %v924 = vunpack.c.l.b16 %v476
        %v925 = vunpack.c.l.b16 %v477
        %v926 = vunpack.c.l.b16 %v478
        %v927 = vunpack.c.l.b16 %v479
        %v928 = vunpack.c.l.b16 %v480
        %v929 = vunpack.c.l.b16 %v481
        %v930 = vunpack.c.l.b16 %v482
        %v931 = vunpack.c.l.b16 %v483
        %v932 = vunpack.c.l.b16 %v484
        %v933 = vunpack.c.l.b16 %v485
        %v934 = vunpack.c.l.b16 %v486
        %v935 = vunpack.c.l.b16 %v487
        %v936 = vunpack.c.l.b16 %v488
        %v937 = vunpack.c.l.b16 %v489
        %v938 = vunpack.c.l.b16 %v490
        %v939 = vunpack.c.l.b16 %v491
        %v940 = vunpack.c.l.b16 %v492
        %v941 = vunpack.c.l.b16 %v493
        %v942 = vunpack.c.l.b16 %v494
        %v943 = vunpack.c.l.b16 %v495
        %v944 = vunpack.c.l.b16 %v496
        %v945 = vunpack.c.l.b16 %v497
        %v946 = vunpack.c.l.b16 %v498
        %v947 = vunpack.c.l.b16 %v499
        %v948 = vunpack.c.l.b16 %v500
        %v949 = vunpack.c.l.b16 %v501
        %v950 = vunpack.c.l.b16 %v502
        %v951 = vunpack.c.l.b16 %v503
        %v952 = vunpack.c.l.b16 %v504
        %v953 = vunpack.c.l.b16 %v505
        %v954 = vunpack.c.l.b16 %v506
        %v955 = vunpack.c.l.b16 %v507
        %v956 = vpack.c.b16 %v893, %v892
        %v957 = vpack.c.b16 %v895, %v894
        %v958 = vpack.c.b16 %v897, %v896
        %v959 = vpack.c.b16 %v899, %v898
        %v960 = vpack.c.b16 %v901, %v900
        %v961 = vpack.c.b16 %v903, %v902
        %v962 = vpack.c.b16 %v905, %v904
        %v963 = vpack.c.b16 %v907, %v906
        %v964 = vpack.c.b16 %v909, %v908
        %v965 = vpack.c.b16 %v911, %v910
        %v966 = vpack.c.b16 %v913, %v912
        %v967 = vpack.c.b16 %v915, %v914
        %v968 = vpack.c.b16 %v917, %v916
        %v969 = vpack.c.b16 %v919, %v918
        %v970 = vpack.c.b16 %v921, %v920
        %v971 = vpack.c.b16 %v923, %v922
        %v972 = vpack.c.b16 %v925, %v924
        %v973 = vpack.c.b16 %v927, %v926
        %v974 = vpack.c.b16 %v929, %v928
        %v975 = vpack.c.b16 %v931, %v930
        %v976 = vpack.c.b16 %v933, %v932
        %v977 = vpack.c.b16 %v935, %v934
        %v978 = vpack.c.b16 %v937, %v936
        %v979 = vpack.c.b16 %v939, %v938
        %v980 = vpack.c.b16 %v941, %v940
        %v981 = vpack.c.b16 %v943, %v942
        %v982 = vpack.c.b16 %v945, %v944
        %v983 = vpack.c.b16 %v947, %v946
        %v984 = vpack.c.b16 %v949, %v948
        %v985 = vpack.c.b16 %v951, %v950
        %v986 = vpack.c.b16 %v953, %v952
        %v987 = vpack.c.b16 %v955, %v954
        %1020 = vmatprep.subr.bf16.mxu0 0
        %1021 = vmatpush1.bf16.msra.mxu0 %v956
        %1022 = vmatprep.subr.bf16.mxu0 0
        %1023 = vmatpush1.bf16.msra.mxu0 %v957
        %1024 = vmatprep.subr.bf16.mxu0 0
        %1025 = vmatpush1.bf16.msra.mxu0 %v958
        %1026 = vmatprep.subr.bf16.mxu0 0
        %1027 = vmatpush1.bf16.msra.mxu0 %v959
        %1028 = vmatprep.subr.bf16.mxu0 0
        %1029 = vmatpush1.bf16.msra.mxu0 %v960
        %1030 = vmatprep.subr.bf16.mxu0 0
        %1031 = vmatpush1.bf16.msra.mxu0 %v961
        %1032 = vmatprep.subr.bf16.mxu0 0
        %1033 = vmatpush1.bf16.msra.mxu0 %v962
        %1034 = vmatprep.subr.bf16.mxu0 0
        %1035 = vmatpush1.bf16.msra.mxu0 %v963
        %1036 = vmatprep.subr.bf16.mxu0 0
        %1037 = vmatpush1.bf16.msra.mxu0 %v964
        %1038 = vmatprep.subr.bf16.mxu0 0
        %1039 = vmatpush1.bf16.msra.mxu0 %v965
        %1040 = vmatprep.subr.bf16.mxu0 0
        %1041 = vmatpush1.bf16.msra.mxu0 %v966
        %1042 = vmatprep.subr.bf16.mxu0 0
        %1043 = vmatpush1.bf16.msra.mxu0 %v967
        %1044 = vmatprep.subr.bf16.mxu0 0
        %1045 = vmatpush1.bf16.msra.mxu0 %v968
        %1046 = vmatprep.subr.bf16.mxu0 0
        %1047 = vmatpush1.bf16.msra.mxu0 %v969
        %1048 = vmatprep.subr.bf16.mxu0 0
        %1049 = vmatpush1.bf16.msra.mxu0 %v970
        %1050 = vmatprep.subr.bf16.mxu0 0
        %1051 = vmatpush1.bf16.msra.mxu0 %v971
        %1052 = vmatprep.mubr.bf16.mxu0 %v701
        %1053 = vmatmul.mubr.bf16.gmra.mrb[0].mxu0 %v700
        %v1054 = vpop.f32.mrb[0].mxu0
        %v1055 = vadd.f32 0.0, %v1054
        %v1056 = vpop.f32.mrb[0].mxu0
        %v1057 = vpop.f32.mrb[0].mxu0
        %v1058 = vadd.f32 0.0, %v1057
        %v1059 = vpop.f32.mrb[0].mxu0
        %1060 = vmatprep.mubr.bf16.mxu0 %v705
        %1061 = vmatmul.mubr.bf16.gmra.mrb[0].mxu0 %v704
        %v1062 = vpop.f32.mrb[0].mxu0
        %v1063 = vadd.f32 0.0, %v1062
        %v1064 = vpop.f32.mrb[0].mxu0
        %v1065 = vpop.f32.mrb[0].mxu0
        %v1066 = vadd.f32 0.0, %v1065
        %v1067 = vpop.f32.mrb[0].mxu0
        %1068 = vmatprep.mubr.bf16.mxu0 %v709
        %1069 = vmatmul.mubr.bf16.gmra.mrb[0].mxu0 %v708
        %v1070 = vpop.f32.mrb[0].mxu0
        %v1071 = vadd.f32 0.0, %v1070
        %v1072 = vpop.f32.mrb[0].mxu0
        %v1073 = vpop.f32.mrb[0].mxu0
        %v1074 = vadd.f32 0.0, %v1073
        %v1075 = vpop.f32.mrb[0].mxu0
        %1076 = vmatprep.mubr.bf16.mxu0 %v713
        %1077 = vmatmul.mubr.bf16.gmra.mrb[0].mxu0 %v712
        %v1078 = vpop.f32.mrb[0].mxu0
        %v1079 = vadd.f32 0.0, %v1078
        %v1080 = vpop.f32.mrb[0].mxu0
        %v1081 = vpop.f32.mrb[0].mxu0
        %v1082 = vadd.f32 0.0, %v1081
        %v1083 = vpop.f32.mrb[0].mxu0
        %1084 = vmatprep.mubr.bf16.mxu0 %v717
        %1085 = vmatmul.mubr.bf16.gmra.mrb[0].mxu0 %v716
        %v1086 = vpop.f32.mrb[0].mxu0
        %v1087 = vadd.f32 0.0, %v1086
        %v1088 = vpop.f32.mrb[0].mxu0
        %v1089 = vpop.f32.mrb[0].mxu0
        %v1090 = vadd.f32 0.0, %v1089
        %v1091 = vpop.f32.mrb[0].mxu0
        %1092 = vmatprep.mubr.bf16.mxu0 %v721
        %1093 = vmatmul.mubr.bf16.gmra.mrb[0].mxu0 %v720
        %v1094 = vpop.f32.mrb[0].mxu0
        %v1095 = vadd.f32 0.0, %v1094
        %v1096 = vpop.f32.mrb[0].mxu0
        %v1097 = vpop.f32.mrb[0].mxu0
        %v1098 = vadd.f32 0.0, %v1097
        %v1099 = vpop.f32.mrb[0].mxu0
        %1100 = vmatprep.mubr.bf16.mxu0 %v725
        %1101 = vmatmul.mubr.bf16.gmra.mrb[0].mxu0 %v724
        %v1102 = vpop.f32.mrb[0].mxu0
        %v1103 = vadd.f32 0.0, %v1102
        %v1104 = vpop.f32.mrb[0].mxu0
        %v1105 = vpop.f32.mrb[0].mxu0
        %v1106 = vadd.f32 0.0, %v1105
        %v1107 = vpop.f32.mrb[0].mxu0
        %1108 = vmatprep.mubr.bf16.mxu0 %v729
        %1109 = vmatmul.mubr.bf16.gmra.mrb[0].mxu0 %v728
        %v1110 = vpop.f32.mrb[0].mxu0
        %v1111 = vadd.f32 0.0, %v1110
        %v1112 = vpop.f32.mrb[0].mxu0
        %v1113 = vpop.f32.mrb[0].mxu0
        %v1114 = vadd.f32 0.0, %v1113
        %v1115 = vpop.f32.mrb[0].mxu0
        %1116 = vmatprep.mubr.bf16.mxu0 %v733
        %1117 = vmatmul.mubr.bf16.gmra.mrb[0].mxu0 %v732
        %v1118 = vpop.f32.mrb[0].mxu0
        %v1119 = vadd.f32 0.0, %v1118
        %v1120 = vpop.f32.mrb[0].mxu0
        %v1121 = vpop.f32.mrb[0].mxu0
        %v1122 = vadd.f32 0.0, %v1121
        %v1123 = vpop.f32.mrb[0].mxu0
        %1124 = vmatprep.mubr.bf16.mxu0 %v737
        %1125 = vmatmul.mubr.bf16.gmra.mrb[0].mxu0 %v736
        %v1126 = vpop.f32.mrb[0].mxu0
        %v1127 = vadd.f32 0.0, %v1126
        %v1128 = vpop.f32.mrb[0].mxu0
        %v1129 = vpop.f32.mrb[0].mxu0
        %v1130 = vadd.f32 0.0, %v1129
        %v1131 = vpop.f32.mrb[0].mxu0
        %1132 = vmatprep.mubr.bf16.mxu0 %v741
        %1133 = vmatmul.mubr.bf16.gmra.mrb[0].mxu0 %v740
        %v1134 = vpop.f32.mrb[0].mxu0
        %v1135 = vadd.f32 0.0, %v1134
        %v1136 = vpop.f32.mrb[0].mxu0
        %v1137 = vpop.f32.mrb[0].mxu0
        %v1138 = vadd.f32 0.0, %v1137
        %v1139 = vpop.f32.mrb[0].mxu0
        %1140 = vmatprep.mubr.bf16.mxu0 %v745
        %1141 = vmatmul.mubr.bf16.gmra.mrb[0].mxu0 %v744
        %v1142 = vpop.f32.mrb[0].mxu0
        %v1143 = vadd.f32 0.0, %v1142
        %v1144 = vpop.f32.mrb[0].mxu0
        %v1145 = vpop.f32.mrb[0].mxu0
        %v1146 = vadd.f32 0.0, %v1145
        %v1147 = vpop.f32.mrb[0].mxu0
        %1148 = vmatprep.mubr.bf16.mxu0 %v749
        %1149 = vmatmul.mubr.bf16.gmra.mrb[0].mxu0 %v748
        %v1150 = vpop.f32.mrb[0].mxu0
        %v1151 = vadd.f32 0.0, %v1150
        %v1152 = vpop.f32.mrb[0].mxu0
        %v1153 = vpop.f32.mrb[0].mxu0
        %v1154 = vadd.f32 0.0, %v1153
        %v1155 = vpop.f32.mrb[0].mxu0
        %1156 = vmatprep.mubr.bf16.mxu0 %v753
        %1157 = vmatmul.mubr.bf16.gmra.mrb[0].mxu0 %v752
        %v1158 = vpop.f32.mrb[0].mxu0
        %v1159 = vadd.f32 0.0, %v1158
        %v1160 = vpop.f32.mrb[0].mxu0
        %v1161 = vpop.f32.mrb[0].mxu0
        %v1162 = vadd.f32 0.0, %v1161
        %v1163 = vpop.f32.mrb[0].mxu0
        %1164 = vmatprep.mubr.bf16.mxu0 %v757
        %1165 = vmatmul.mubr.bf16.gmra.mrb[0].mxu0 %v756
        %v1166 = vpop.f32.mrb[0].mxu0
        %v1167 = vadd.f32 0.0, %v1166
        %v1168 = vpop.f32.mrb[0].mxu0
        %v1169 = vpop.f32.mrb[0].mxu0
        %v1170 = vadd.f32 0.0, %v1169
        %v1171 = vpop.f32.mrb[0].mxu0
        %1172 = vmatprep.mubr.bf16.mxu0 %v761
        %1173 = vmatmul.mubr.bf16.gmra.mrb[0].mxu0 %v760
        %v1174 = vpop.f32.mrb[0].mxu0
        %v1175 = vadd.f32 0.0, %v1174
        %v1176 = vpop.f32.mrb[0].mxu0
        %v1177 = vpop.f32.mrb[0].mxu0
        %v1178 = vadd.f32 0.0, %v1177
        %v1179 = vpop.f32.mrb[0].mxu0
        %1180 = vdwg.mxu0
        %1181 = vmatprep.subr.bf16.mxu0 0
        %1182 = vmatpush1.bf16.msra.mxu0 %v972
        %1183 = vmatprep.subr.bf16.mxu0 0
        %1184 = vmatpush1.bf16.msra.mxu0 %v973
        %1185 = vmatprep.subr.bf16.mxu0 0
        %1186 = vmatpush1.bf16.msra.mxu0 %v974
        %1187 = vmatprep.subr.bf16.mxu0 0
        %1188 = vmatpush1.bf16.msra.mxu0 %v975
        %1189 = vmatprep.subr.bf16.mxu0 0
        %1190 = vmatpush1.bf16.msra.mxu0 %v976
        %1191 = vmatprep.subr.bf16.mxu0 0
        %1192 = vmatpush1.bf16.msra.mxu0 %v977
        %1193 = vmatprep.subr.bf16.mxu0 0
        %1194 = vmatpush1.bf16.msra.mxu0 %v978
        %1195 = vmatprep.subr.bf16.mxu0 0
        %1196 = vmatpush1.bf16.msra.mxu0 %v979
        %1197 = vmatprep.subr.bf16.mxu0 0
        %1198 = vmatpush1.bf16.msra.mxu0 %v980
        %1199 = vmatprep.subr.bf16.mxu0 0
        %1200 = vmatpush1.bf16.msra.mxu0 %v981
        %1201 = vmatprep.subr.bf16.mxu0 0
        %1202 = vmatpush1.bf16.msra.mxu0 %v982
        %1203 = vmatprep.subr.bf16.mxu0 0
        %1204 = vmatpush1.bf16.msra.mxu0 %v983
        %1205 = vmatprep.subr.bf16.mxu0 0
        %1206 = vmatpush1.bf16.msra.mxu0 %v984
        %1207 = vmatprep.subr.bf16.mxu0 0
        %1208 = vmatpush1.bf16.msra.mxu0 %v985
        %1209 = vmatprep.subr.bf16.mxu0 0
        %1210 = vmatpush1.bf16.msra.mxu0 %v986
        %1211 = vmatprep.subr.bf16.mxu0 0
        %1212 = vmatpush1.bf16.msra.mxu0 %v987
        %1213 = vmatprep.mubr.bf16.mxu0 %v703
        %1214 = vmatmul.mubr.bf16.gmra.mrb[0].mxu0 %v702
        %v1215 = vpop.f32.mrb[0].mxu0
        %v1216 = vadd.f32 %v1055, %v1215
        %v1217 = vpop.f32.mrb[0].mxu0
        %v1218 = vpop.f32.mrb[0].mxu0
        %v1219 = vadd.f32 %v1058, %v1218
        %v1220 = vpop.f32.mrb[0].mxu0
        %1221 = vmatprep.mubr.bf16.mxu0 %v707
        %1222 = vmatmul.mubr.bf16.gmra.mrb[0].mxu0 %v706
        %v1223 = vpop.f32.mrb[0].mxu0
        %v1224 = vadd.f32 %v1063, %v1223
        %v1225 = vpop.f32.mrb[0].mxu0
        %v1226 = vpop.f32.mrb[0].mxu0
        %v1227 = vadd.f32 %v1066, %v1226
        %v1228 = vpop.f32.mrb[0].mxu0
        %1229 = vmatprep.mubr.bf16.mxu0 %v711
        %1230 = vmatmul.mubr.bf16.gmra.mrb[0].mxu0 %v710
        %v1231 = vpop.f32.mrb[0].mxu0
        %v1232 = vadd.f32 %v1071, %v1231
        %v1233 = vpop.f32.mrb[0].mxu0
        %v1234 = vpop.f32.mrb[0].mxu0
        %v1235 = vadd.f32 %v1074, %v1234
        %v1236 = vpop.f32.mrb[0].mxu0
        %1237 = vmatprep.mubr.bf16.mxu0 %v715
        %1238 = vmatmul.mubr.bf16.gmra.mrb[0].mxu0 %v714
        %v1239 = vpop.f32.mrb[0].mxu0
        %v1240 = vadd.f32 %v1079, %v1239
        %v1241 = vpop.f32.mrb[0].mxu0
        %v1242 = vpop.f32.mrb[0].mxu0
        %v1243 = vadd.f32 %v1082, %v1242
        %v1244 = vpop.f32.mrb[0].mxu0
        %1245 = vmatprep.mubr.bf16.mxu0 %v719
        %1246 = vmatmul.mubr.bf16.gmra.mrb[0].mxu0 %v718
        %v1247 = vpop.f32.mrb[0].mxu0
        %v1248 = vadd.f32 %v1087, %v1247
        %v1249 = vpop.f32.mrb[0].mxu0
        %v1250 = vpop.f32.mrb[0].mxu0
        %v1251 = vadd.f32 %v1090, %v1250
        %v1252 = vpop.f32.mrb[0].mxu0
        %1253 = vmatprep.mubr.bf16.mxu0 %v723
        %1254 = vmatmul.mubr.bf16.gmra.mrb[0].mxu0 %v722
        %v1255 = vpop.f32.mrb[0].mxu0
        %v1256 = vadd.f32 %v1095, %v1255
        %v1257 = vpop.f32.mrb[0].mxu0
        %v1258 = vpop.f32.mrb[0].mxu0
        %v1259 = vadd.f32 %v1098, %v1258
        %v1260 = vpop.f32.mrb[0].mxu0
        %1261 = vmatprep.mubr.bf16.mxu0 %v727
        %1262 = vmatmul.mubr.bf16.gmra.mrb[0].mxu0 %v726
        %v1263 = vpop.f32.mrb[0].mxu0
        %v1264 = vadd.f32 %v1103, %v1263
        %v1265 = vpop.f32.mrb[0].mxu0
        %v1266 = vpop.f32.mrb[0].mxu0
        %v1267 = vadd.f32 %v1106, %v1266
        %v1268 = vpop.f32.mrb[0].mxu0
        %1269 = vmatprep.mubr.bf16.mxu0 %v731
        %1270 = vmatmul.mubr.bf16.gmra.mrb[0].mxu0 %v730
        %v1271 = vpop.f32.mrb[0].mxu0
        %v1272 = vadd.f32 %v1111, %v1271
        %v1273 = vpop.f32.mrb[0].mxu0
        %v1274 = vpop.f32.mrb[0].mxu0
        %v1275 = vadd.f32 %v1114, %v1274
        %v1276 = vpop.f32.mrb[0].mxu0
        %1277 = vmatprep.mubr.bf16.mxu0 %v735
        %1278 = vmatmul.mubr.bf16.gmra.mrb[0].mxu0 %v734
        %v1279 = vpop.f32.mrb[0].mxu0
        %v1280 = vadd.f32 %v1119, %v1279
        %v1281 = vpop.f32.mrb[0].mxu0
        %v1282 = vpop.f32.mrb[0].mxu0
        %v1283 = vadd.f32 %v1122, %v1282
        %v1284 = vpop.f32.mrb[0].mxu0
        %1285 = vmatprep.mubr.bf16.mxu0 %v739
        %1286 = vmatmul.mubr.bf16.gmra.mrb[0].mxu0 %v738
        %v1287 = vpop.f32.mrb[0].mxu0
        %v1288 = vadd.f32 %v1127, %v1287
        %v1289 = vpop.f32.mrb[0].mxu0
        %v1290 = vpop.f32.mrb[0].mxu0
        %v1291 = vadd.f32 %v1130, %v1290
        %v1292 = vpop.f32.mrb[0].mxu0
        %1293 = vmatprep.mubr.bf16.mxu0 %v743
        %1294 = vmatmul.mubr.bf16.gmra.mrb[0].mxu0 %v742
        %v1295 = vpop.f32.mrb[0].mxu0
        %v1296 = vadd.f32 %v1135, %v1295
        %v1297 = vpop.f32.mrb[0].mxu0
        %v1298 = vpop.f32.mrb[0].mxu0
        %v1299 = vadd.f32 %v1138, %v1298
        %v1300 = vpop.f32.mrb[0].mxu0
        %1301 = vmatprep.mubr.bf16.mxu0 %v747
        %1302 = vmatmul.mubr.bf16.gmra.mrb[0].mxu0 %v746
        %v1303 = vpop.f32.mrb[0].mxu0
        %v1304 = vadd.f32 %v1143, %v1303
        %v1305 = vpop.f32.mrb[0].mxu0
        %v1306 = vpop.f32.mrb[0].mxu0
        %v1307 = vadd.f32 %v1146, %v1306
        %v1308 = vpop.f32.mrb[0].mxu0
        %1309 = vmatprep.mubr.bf16.mxu0 %v751
        %1310 = vmatmul.mubr.bf16.gmra.mrb[0].mxu0 %v750
        %v1311 = vpop.f32.mrb[0].mxu0
        %v1312 = vadd.f32 %v1151, %v1311
        %v1313 = vpop.f32.mrb[0].mxu0
        %v1314 = vpop.f32.mrb[0].mxu0
        %v1315 = vadd.f32 %v1154, %v1314
        %v1316 = vpop.f32.mrb[0].mxu0
        %1317 = vmatprep.mubr.bf16.mxu0 %v755
        %1318 = vmatmul.mubr.bf16.gmra.mrb[0].mxu0 %v754
        %v1319 = vpop.f32.mrb[0].mxu0
        %v1320 = vadd.f32 %v1159, %v1319
        %v1321 = vpop.f32.mrb[0].mxu0
        %v1322 = vpop.f32.mrb[0].mxu0
        %v1323 = vadd.f32 %v1162, %v1322
        %v1324 = vpop.f32.mrb[0].mxu0
        %1325 = vmatprep.mubr.bf16.mxu0 %v759
        %1326 = vmatmul.mubr.bf16.gmra.mrb[0].mxu0 %v758
        %v1327 = vpop.f32.mrb[0].mxu0
        %v1328 = vadd.f32 %v1167, %v1327
        %v1329 = vpop.f32.mrb[0].mxu0
        %v1330 = vpop.f32.mrb[0].mxu0
        %v1331 = vadd.f32 %v1170, %v1330
        %v1332 = vpop.f32.mrb[0].mxu0
        %1333 = vmatprep.mubr.bf16.mxu0 %v763
        %1334 = vmatmul.mubr.bf16.gmra.mrb[0].mxu0 %v762
        %v1335 = vpop.f32.mrb[0].mxu0
        %v1336 = vadd.f32 %v1175, %v1335
        %v1337 = vpop.f32.mrb[0].mxu0
        %v1338 = vpop.f32.mrb[0].mxu0
        %v1339 = vadd.f32 %v1178, %v1338
        %v1340 = vpop.f32.mrb[0].mxu0
        %1341 = vdwg.mxu0
        %v1342 = vadd.f32 %v348, %v1216
        %v1343 = vadd.f32 %v349, %v1219
        %v1344 = vadd.f32 %v350, %v1224
        %v1345 = vadd.f32 %v351, %v1227
        %v1346 = vadd.f32 %v352, %v1232
        %v1347 = vadd.f32 %v353, %v1235
        %v1348 = vadd.f32 %v354, %v1240
        %v1349 = vadd.f32 %v355, %v1243
        %v1350 = vadd.f32 %v356, %v1248
        %v1351 = vadd.f32 %v357, %v1251
        %v1352 = vadd.f32 %v358, %v1256
        %v1353 = vadd.f32 %v359, %v1259
        %v1354 = vadd.f32 %v360, %v1264
        %v1355 = vadd.f32 %v361, %v1267
        %v1356 = vadd.f32 %v362, %v1272
        %v1357 = vadd.f32 %v363, %v1275
        %v1358 = vadd.f32 %v364, %v1280
        %v1359 = vadd.f32 %v365, %v1283
        %v1360 = vadd.f32 %v366, %v1288
        %v1361 = vadd.f32 %v367, %v1291
        %v1362 = vadd.f32 %v368, %v1296
        %v1363 = vadd.f32 %v369, %v1299
        %v1364 = vadd.f32 %v370, %v1304
        %v1365 = vadd.f32 %v371, %v1307
        %v1366 = vadd.f32 %v372, %v1312
        %v1367 = vadd.f32 %v373, %v1315
        %v1368 = vadd.f32 %v374, %v1320
        %v1369 = vadd.f32 %v375, %v1323
        %v1370 = vadd.f32 %v376, %v1328
        %v1371 = vadd.f32 %v377, %v1331
        %v1372 = vadd.f32 %v378, %v1336
        %v1373 = vadd.f32 %v379, %v1339
        %1374 = vst [vmem:[#allocation2] sm:$0xff] %v1342
        %1375 = vst [vmem:[#allocation2 + $0x8] sm:$0xff] %v1343
        %1376 = vst [vmem:[#allocation2 + $0x10] sm:$0xff] %v1344
        %1377 = vst [vmem:[#allocation2 + $0x18] sm:$0xff] %v1345
        %1378 = vst [vmem:[#allocation2 + $0x20] sm:$0xff] %v1346
        %1379 = vst [vmem:[#allocation2 + $0x28] sm:$0xff] %v1347
        %1380 = vst [vmem:[#allocation2 + $0x30] sm:$0xff] %v1348
        %1381 = vst [vmem:[#allocation2 + $0x38] sm:$0xff] %v1349
        %1382 = vst [vmem:[#allocation2 + $0x40] sm:$0xff] %v1350
        %1383 = vst [vmem:[#allocation2 + $0x48] sm:$0xff] %v1351
        %1384 = vst [vmem:[#allocation2 + $0x50] sm:$0xff] %v1352
        %1385 = vst [vmem:[#allocation2 + $0x58] sm:$0xff] %v1353
        %1386 = vst [vmem:[#allocation2 + $0x60] sm:$0xff] %v1354
        %1387 = vst [vmem:[#allocation2 + $0x68] sm:$0xff] %v1355
        %1388 = vst [vmem:[#allocation2 + $0x70] sm:$0xff] %v1356
        %1389 = vst [vmem:[#allocation2 + $0x78] sm:$0xff] %v1357
        %1390 = vst [vmem:[#allocation2 + $0x80] sm:$0xff] %v1358
        %1391 = vst [vmem:[#allocation2 + $0x88] sm:$0xff] %v1359
        %1392 = vst [vmem:[#allocation2 + $0x90] sm:$0xff] %v1360
        %1393 = vst [vmem:[#allocation2 + $0x98] sm:$0xff] %v1361
        %1394 = vst [vmem:[#allocation2 + $0xa0] sm:$0xff] %v1362
        %1395 = vst [vmem:[#allocation2 + $0xa8] sm:$0xff] %v1363
        %1396 = vst [vmem:[#allocation2 + $0xb0] sm:$0xff] %v1364
        %1397 = vst [vmem:[#allocation2 + $0xb8] sm:$0xff] %v1365
        %1398 = vst [vmem:[#allocation2 + $0xc0] sm:$0xff] %v1366
        %1399 = vst [vmem:[#allocation2 + $0xc8] sm:$0xff] %v1367
        %1400 = vst [vmem:[#allocation2 + $0xd0] sm:$0xff] %v1368
        %1401 = vst [vmem:[#allocation2 + $0xd8] sm:$0xff] %v1369
        %1402 = vst [vmem:[#allocation2 + $0xe0] sm:$0xff] %v1370
        %1403 = vst [vmem:[#allocation2 + $0xe8] sm:$0xff] %v1371
        %1404 = vst [vmem:[#allocation2 + $0xf0] sm:$0xff] %v1372
        %1405 = vst [vmem:[#allocation2 + $0xf8] sm:$0xff] %v1373
        // Predicated region
        $region57: #{tpu_custom_call.1} parent=35 // pred_check
          %p1406 = pneg %p312
        $region58: #{tpu_custom_call.1} parent=35 // pred_check_branch
          %1408 = sbr.rel (%p1406) target = $region60
        $region59: #{tpu_custom_call.1} parent=35 // pred_region
          %v1409 = vld [vmem:[#allocation2] sm:$0xff]
          %v1410 = vld [vmem:[#allocation2 + $0x8] sm:$0xff]
          %v1411 = vld [vmem:[#allocation2 + $0x10] sm:$0xff]
          %v1412 = vld [vmem:[#allocation2 + $0x18] sm:$0xff]
          %v1413 = vld [vmem:[#allocation2 + $0x20] sm:$0xff]
          %v1414 = vld [vmem:[#allocation2 + $0x28] sm:$0xff]
          %v1415 = vld [vmem:[#allocation2 + $0x30] sm:$0xff]
          %v1416 = vld [vmem:[#allocation2 + $0x38] sm:$0xff]
          %v1417 = vld [vmem:[#allocation2 + $0x40] sm:$0xff]
          %v1418 = vld [vmem:[#allocation2 + $0x48] sm:$0xff]
          %v1419 = vld [vmem:[#allocation2 + $0x50] sm:$0xff]
          %v1420 = vld [vmem:[#allocation2 + $0x58] sm:$0xff]
          %v1421 = vld [vmem:[#allocation2 + $0x60] sm:$0xff]
          %v1422 = vld [vmem:[#allocation2 + $0x68] sm:$0xff]
          %v1423 = vld [vmem:[#allocation2 + $0x70] sm:$0xff]
          %v1424 = vld [vmem:[#allocation2 + $0x78] sm:$0xff]
          %v1425 = vld [vmem:[#allocation2 + $0x80] sm:$0xff]
          %v1426 = vld [vmem:[#allocation2 + $0x88] sm:$0xff]
          %v1427 = vld [vmem:[#allocation2 + $0x90] sm:$0xff]
          %v1428 = vld [vmem:[#allocation2 + $0x98] sm:$0xff]
          %v1429 = vld [vmem:[#allocation2 + $0xa0] sm:$0xff]
          %v1430 = vld [vmem:[#allocation2 + $0xa8] sm:$0xff]
          %v1431 = vld [vmem:[#allocation2 + $0xb0] sm:$0xff]
          %v1432 = vld [vmem:[#allocation2 + $0xb8] sm:$0xff]
          %v1433 = vld [vmem:[#allocation2 + $0xc0] sm:$0xff]
          %v1434 = vld [vmem:[#allocation2 + $0xc8] sm:$0xff]
          %v1435 = vld [vmem:[#allocation2 + $0xd0] sm:$0xff]
          %v1436 = vld [vmem:[#allocation2 + $0xd8] sm:$0xff]
          %v1437 = vld [vmem:[#allocation2 + $0xe0] sm:$0xff]
          %v1438 = vld [vmem:[#allocation2 + $0xe8] sm:$0xff]
          %v1439 = vld [vmem:[#allocation2 + $0xf0] sm:$0xff]
          %v1440 = vld [vmem:[#allocation2 + $0xf8] sm:$0xff]
          %v1441 = vld [vmem:[#allocation8] sm:$0x1]
          %v1443 = vlaneseq
          %v1444 = vshrl.u32 %v1443, 7
          %v1445 = vsub.s32 0, %v1444
          %v1446 = vrot.slane %v1441, %v1445
          %v1448 = vmul.f32 %v1409, %v1446
          %v1449 = vmul.f32 %v1410, %v1446
          %v1450 = vmul.f32 %v1411, %v1446
          %v1451 = vmul.f32 %v1412, %v1446
          %v1452 = vmul.f32 %v1413, %v1446
          %v1453 = vmul.f32 %v1414, %v1446
          %v1454 = vmul.f32 %v1415, %v1446
          %v1455 = vmul.f32 %v1416, %v1446
          %v1456 = vmul.f32 %v1417, %v1446
          %v1457 = vmul.f32 %v1418, %v1446
          %v1458 = vmul.f32 %v1419, %v1446
          %v1459 = vmul.f32 %v1420, %v1446
          %v1460 = vmul.f32 %v1421, %v1446
          %v1461 = vmul.f32 %v1422, %v1446
          %v1462 = vmul.f32 %v1423, %v1446
          %v1463 = vmul.f32 %v1424, %v1446
          %v1464 = vmul.f32 %v1425, %v1446
          %v1465 = vmul.f32 %v1426, %v1446
          %v1466 = vmul.f32 %v1427, %v1446
          %v1467 = vmul.f32 %v1428, %v1446
          %v1468 = vmul.f32 %v1429, %v1446
          %v1469 = vmul.f32 %v1430, %v1446
          %v1470 = vmul.f32 %v1431, %v1446
          %v1471 = vmul.f32 %v1432, %v1446
          %v1472 = vmul.f32 %v1433, %v1446
          %v1473 = vmul.f32 %v1434, %v1446
          %v1474 = vmul.f32 %v1435, %v1446
          %v1475 = vmul.f32 %v1436, %v1446
          %v1476 = vmul.f32 %v1437, %v1446
          %v1477 = vmul.f32 %v1438, %v1446
          %v1478 = vmul.f32 %v1439, %v1446
          %v1479 = vmul.f32 %v1440, %v1446
          %v1480 = vld [vmem:[#allocation9] sm:$0x1]
          %v1482 = vlaneseq
          %v1483 = vshrl.u32 %v1482, 7
          %v1484 = vsub.s32 0, %v1483
          %v1485 = vrot.slane %v1480, %v1484
          %v1487 = vadd.f32 %v1448, %v1485
          %v1488 = vadd.f32 %v1449, %v1485
          %v1489 = vadd.f32 %v1450, %v1485
          %v1490 = vadd.f32 %v1451, %v1485
          %v1491 = vadd.f32 %v1452, %v1485
          %v1492 = vadd.f32 %v1453, %v1485
          %v1493 = vadd.f32 %v1454, %v1485
          %v1494 = vadd.f32 %v1455, %v1485
          %v1495 = vadd.f32 %v1456, %v1485
          %v1496 = vadd.f32 %v1457, %v1485
          %v1497 = vadd.f32 %v1458, %v1485
          %v1498 = vadd.f32 %v1459, %v1485
          %v1499 = vadd.f32 %v1460, %v1485
          %v1500 = vadd.f32 %v1461, %v1485
          %v1501 = vadd.f32 %v1462, %v1485
          %v1502 = vadd.f32 %v1463, %v1485
          %v1503 = vadd.f32 %v1464, %v1485
          %v1504 = vadd.f32 %v1465, %v1485
          %v1505 = vadd.f32 %v1466, %v1485
          %v1506 = vadd.f32 %v1467, %v1485
          %v1507 = vadd.f32 %v1468, %v1485
          %v1508 = vadd.f32 %v1469, %v1485
          %v1509 = vadd.f32 %v1470, %v1485
          %v1510 = vadd.f32 %v1471, %v1485
          %v1511 = vadd.f32 %v1472, %v1485
          %v1512 = vadd.f32 %v1473, %v1485
          %v1513 = vadd.f32 %v1474, %v1485
          %v1514 = vadd.f32 %v1475, %v1485
          %v1515 = vadd.f32 %v1476, %v1485
          %v1516 = vadd.f32 %v1477, %v1485
          %v1517 = vadd.f32 %v1478, %v1485
          %v1518 = vadd.f32 %v1479, %v1485
          %v1519 = vmax.f32 %v1487, 0.0
          %v1520 = vmax.f32 %v1488, 0.0
          %v1521 = vmax.f32 %v1489, 0.0
          %v1522 = vmax.f32 %v1490, 0.0
          %v1523 = vmax.f32 %v1491, 0.0
          %v1524 = vmax.f32 %v1492, 0.0
          %v1525 = vmax.f32 %v1493, 0.0
          %v1526 = vmax.f32 %v1494, 0.0
          %v1527 = vmax.f32 %v1495, 0.0
          %v1528 = vmax.f32 %v1496, 0.0
          %v1529 = vmax.f32 %v1497, 0.0
          %v1530 = vmax.f32 %v1498, 0.0
          %v1531 = vmax.f32 %v1499, 0.0
          %v1532 = vmax.f32 %v1500, 0.0
          %v1533 = vmax.f32 %v1501, 0.0
          %v1534 = vmax.f32 %v1502, 0.0
          %v1535 = vmax.f32 %v1503, 0.0
          %v1536 = vmax.f32 %v1504, 0.0
          %v1537 = vmax.f32 %v1505, 0.0
          %v1538 = vmax.f32 %v1506, 0.0
          %v1539 = vmax.f32 %v1507, 0.0
          %v1540 = vmax.f32 %v1508, 0.0
          %v1541 = vmax.f32 %v1509, 0.0
          %v1542 = vmax.f32 %v1510, 0.0
          %v1543 = vmax.f32 %v1511, 0.0
          %v1544 = vmax.f32 %v1512, 0.0
          %v1545 = vmax.f32 %v1513, 0.0
          %v1546 = vmax.f32 %v1514, 0.0
          %v1547 = vmax.f32 %v1515, 0.0
          %v1548 = vmax.f32 %v1516, 0.0
          %v1549 = vmax.f32 %v1517, 0.0
          %v1550 = vmax.f32 %v1518, 0.0
          %1551 = vst [vmem:[%s306] sm:$0xff] %v1519
          %1552 = vst [vmem:[%s306 + $0x8] sm:$0xff] %v1520
          %1553 = vst [vmem:[%s306 + $0x10] sm:$0xff] %v1521
          %1554 = vst [vmem:[%s306 + $0x18] sm:$0xff] %v1522
          %1555 = vst [vmem:[%s306 + $0x20] sm:$0xff] %v1523
          %1556 = vst [vmem:[%s306 + $0x28] sm:$0xff] %v1524
          %1557 = vst [vmem:[%s306 + $0x30] sm:$0xff] %v1525
          %1558 = vst [vmem:[%s306 + $0x38] sm:$0xff] %v1526
          %1559 = vst [vmem:[%s306 + $0x40] sm:$0xff] %v1527
          %1560 = vst [vmem:[%s306 + $0x48] sm:$0xff] %v1528
          %1561 = vst [vmem:[%s306 + $0x50] sm:$0xff] %v1529
          %1562 = vst [vmem:[%s306 + $0x58] sm:$0xff] %v1530
          %1563 = vst [vmem:[%s306 + $0x60] sm:$0xff] %v1531
          %1564 = vst [vmem:[%s306 + $0x68] sm:$0xff] %v1532
          %1565 = vst [vmem:[%s306 + $0x70] sm:$0xff] %v1533
          %1566 = vst [vmem:[%s306 + $0x78] sm:$0xff] %v1534
          %1567 = vst [vmem:[%s306 + $0x80] sm:$0xff] %v1535
          %1568 = vst [vmem:[%s306 + $0x88] sm:$0xff] %v1536
          %1569 = vst [vmem:[%s306 + $0x90] sm:$0xff] %v1537
          %1570 = vst [vmem:[%s306 + $0x98] sm:$0xff] %v1538
          %1571 = vst [vmem:[%s306 + $0xa0] sm:$0xff] %v1539
          %1572 = vst [vmem:[%s306 + $0xa8] sm:$0xff] %v1540
          %1573 = vst [vmem:[%s306 + $0xb0] sm:$0xff] %v1541
          %1574 = vst [vmem:[%s306 + $0xb8] sm:$0xff] %v1542
          %1575 = vst [vmem:[%s306 + $0xc0] sm:$0xff] %v1543
          %1576 = vst [vmem:[%s306 + $0xc8] sm:$0xff] %v1544
          %1577 = vst [vmem:[%s306 + $0xd0] sm:$0xff] %v1545
          %1578 = vst [vmem:[%s306 + $0xd8] sm:$0xff] %v1546
          %1579 = vst [vmem:[%s306 + $0xe0] sm:$0xff] %v1547
          %1580 = vst [vmem:[%s306 + $0xe8] sm:$0xff] %v1548
          %1581 = vst [vmem:[%s306 + $0xf0] sm:$0xff] %v1549
          %1582 = vst [vmem:[%s306 + $0xf8] sm:$0xff] %v1550
        $region60: #{tpu_custom_call.1} parent=35 // pred_fallthru
          _
        %s1583 = sand.u32 %s160, 1
        %s1584 = scalar_lea.sflag [#allocation5], %s1583
        %s1585 = sand.u32 %s160, 1
        %s1586 = smul.addr %s1585, 256
        %s1587 = scalar_lea.vmem [#allocation11], %s1586
        // Predicated region
        $region61: #{tpu_custom_call.1} parent=35 // pred_check
          %p1588 = pneg %p170
        $region62: #{tpu_custom_call.1} parent=35 // pred_check_branch
          %1590 = sbr.rel (%p1588) target = $region64
        $region63: #{tpu_custom_call.1} parent=35 // pred_region
          %s1591 = smul.u32 32, %s28
          %s1593 = ssub.s32 4096, 4096
          %1594 = vsyncadd %s1584, %s1593
          %s1595 = sadd.s32 %s29, %s1591
          %s1596 = smul.addr %s1595, 128
          %s1597 = scalar_lea.hbm %s4, %s1596
          %s1598 = sshll.u32 %s1587, 4
          %s1599 = int_to_ptr.vmem [resolvable:$true] %s1598
          %1604 = dma.vmem_to_hbm [thread:$0]  %s1599, 4096, %s1597, %s1584, 128, 128, 8
        $region64: #{tpu_custom_call.1} parent=35 // pred_fallthru
          _
      $region36: #{tpu_custom_call.1} parent=5 // pred_fallthru
        _
      %p1605 = scmp.le.s32.totalorder 2, %s18
      // Predicated region
      $region65: #{tpu_custom_call.1} parent=5 // pred_check
        %p1606 = pneg %p1605
      $region66: #{tpu_custom_call.1} parent=5 // pred_check_branch
        %1608 = sbr.rel (%p1606) target = $region68
      $region67: #{tpu_custom_call.1} parent=5 // pred_region
        %s1609 = ssub.s32 %s18, 2
        // Predicated region
        $region69: #{tpu_custom_call.1} parent=67 // pred_check
          %p1610 = pneg %p176
        $region70: #{tpu_custom_call.1} parent=67 // pred_check_branch
          %1612 = sbr.rel (%p1610) target = $region72
        $region71: #{tpu_custom_call.1} parent=67 // pred_region
          %s1613 = sand.u32 %s161, 1
          %s1614 = scalar_lea.sflag [#allocation5], %s1613
          %s1615 = sand.u32 %s161, 1
          %s1616 = smul.addr %s1615, 256
          %s1617 = scalar_lea.vmem [#allocation11], %s1616
          %1618 = dma.done %s1614, 4096
        $region72: #{tpu_custom_call.1} parent=67 // pred_fallthru
          _
      $region68: #{tpu_custom_call.1} parent=5 // pred_fallthru
        _
    $region6: #{tpu_custom_call.1} parent=1 // loop_footer
      %s22 = sadd.s32 1, %s18
    $region7: #{tpu_custom_call.1} parent=1 // loop_footer_branch
      %17 = sbr.rel target = $region3
    $region8: #{tpu_custom_call.1} parent=1 // loop_exit
      _
    %1619 = vsyncpa [#allocation4], 1
    %s1620 = scalar_lea.sflag [#allocation4], 1
    %1621 = vsyncpa %s1620, 1
    %1622 = vsyncpa [#allocation7], 1
    %1623 = vsyncpa [#allocation10], 1
    %1624 = vsyncpa [#allocation5], 1
    %s1625 = scalar_lea.sflag [#allocation5], 1
    %1626 = vsyncpa %s1625, 1

</llo_original>
